<compile_context>
chip_gen: v6e
topology: v6e:2x2x1
jax: 0.10.0
libtpu: 0.0.40
codegen_flags: <defaults>
</compile_context>

<pallas_src>
import jax
import jax.numpy as jnp
from jax import lax
from jax.experimental import pallas as pl
from jax.experimental.pallas import tpu as pltpu

# FlowLoss.__init__ hyper-parameters (defaults) -------------------------------
FLOW_TEMP = 0.1
RADIUS = 0.7
KERNEL_SIZE = 5
STRIDE = 2
LOSS_WEIGHT_MARGIN = 0.01
STATIC_THRESHOLD = 0.1
# maximum_entropy = log(KERNEL_SIZE**2)   (only used by the 'entropy' mode)


def _round_up(x, m):
    return ((x + m - 1) // m) * m


# ----------------------------- Pallas kernel --------------------------------
def _flowloss_kernel(scalars_ref, sal_ref, feat_ref, flow_ref, out_ref, fgrid_ref):
    """Grid = (lane tiles, C chunks).  Block index lives on the 128-lane axis.

    sal_ref : (K2, B)       saliency per block position
    feat_ref: (K2, tC, B)   feature chunk per block position (input dtype)
    flow_ref: (2, K2, B)    optical flow (x, y) per block position
    out_ref : (2, B)        row 0 = per-block loss, row 1 = 'norm' weight
    fgrid_ref: (K2, B) f32  scratch: feature-similarity grid accumulator
    """
    c_idx = pl.program_id(1)
    n_c = pl.num_programs(1)

    inv_2sig2 = scalars_ref[0]          # 1 / (2 * (radius*max_norm)^2 + eps)
    thr2 = scalars_ref[1]               # (static_threshold * max_norm)^2

    sal = sal_ref[...].astype(jnp.float32)                   # (K2, B)
    k2 = sal.shape[0]

    # --- saliency argmax over K2 (first maximum, like torch.argmax) ----------
    iota_k = lax.broadcasted_iota(jnp.int32, sal.shape, 0)   # (K2, B)
    sal_max = jnp.max(sal, axis=0, keepdims=True)            # (1, B)
    cand = jnp.where(sal >= sal_max, iota_k, k2)
    amax = jnp.min(cand, axis=0, keepdims=True)              # (1, B) int32

    # --- feature similarity for this C chunk (make_feature_sim_grid) ---------
    # Pass 1: select the anchor feature chunk; select is cheaper than mul+add
    # and stays in the input dtype (bf16 VALU on v6e/v7x).
    anchor = feat_ref[0]                                      # (tC, B)
    for k in range(1, k2):
        anchor = jnp.where(amax == k, feat_ref[k], anchor)
    anchor_f32 = anchor.astype(jnp.float32)

    # Pass 2: feat_grid[k] += sum_c feat[k, c] * anchor[c] for this chunk.
    rows = []
    for k in range(k2):
        fk = feat_ref[k].astype(jnp.float32)                  # (tC, B)
        rows.append(jnp.sum(fk * anchor_f32, axis=0, keepdims=True))
    contrib = jnp.concatenate(rows, axis=0)                   # (K2, B)

    @pl.when(c_idx == 0)
    def _():
        fgrid_ref[...] = jnp.zeros_like(fgrid_ref)

    fgrid_ref[...] += contrib

    # --- finalize on the last C chunk ----------------------------------------
    @pl.when(c_idx == n_c - 1)
    def _():
        flow = flow_ref[...].astype(jnp.float32)              # (2, K2, B)
        fx = flow[0]
        fy = flow[1]
        onehot = (iota_k == amax).astype(jnp.float32)         # (K2, B)
        anchor_fx = jnp.sum(fx * onehot, axis=0, keepdims=True)   # (1, B)
        anchor_fy = jnp.sum(fy * onehot, axis=0, keepdims=True)
        dx = fx - anchor_fx
        dy = fy - anchor_fy
        dist2 = dx * dx + dy * dy                             # (K2, B)
        flow_grid = jnp.exp(-dist2 * inv_2sig2)               # (K2, B)
        anchor_n2 = anchor_fx * anchor_fx + anchor_fy * anchor_fy
        flow_grid = jnp.where(anchor_n2 < thr2, 0.0, flow_grid)

        inv_t = 1.0 / FLOW_TEMP
        # Label softmax: flow_grid/T is bounded in [0, 10] -> exp is safe
        # without the max-shift (saves one XLU max + one VALU subtract).
        lexp = jnp.exp(flow_grid * inv_t)
        lsum = jnp.sum(lexp, axis=0, keepdims=True)
        p_label = lexp * pl.reciprocal(lsum, approx=True)     # (K2, B)

        tp = fgrid_ref[...] * inv_t
        pmax = jnp.max(tp, axis=0, keepdims=True)
        pshift = tp - pmax
        log_p = pshift - jnp.log(jnp.sum(jnp.exp(pshift), axis=0, keepdims=True))

        loss = -jnp.sum(p_label * log_p, axis=0, keepdims=True)    # (1, B)
        w = jnp.maximum(
            jnp.sum(flow_grid, axis=0, keepdims=True) * (1.0 / k2)
            - LOSS_WEIGHT_MARGIN, 0.0)                             # (1, B)

        out_ref[...] = jnp.concatenate([loss, w], axis=0)          # (2, B)


# ------------------------------- JAX glue ------------------------------------
def _extract_blocks_lane_major(feat, flow, saliency, k, s):
    """Unfold directly into lane-major layouts (block index on the last axis).

    feat: (N,H,W,C) -> (K2, C, NL);  flow -> (2, K2, NL);  sal -> (K2, NL).
    The gather output is already in the kernel layout, so no transpose of the
    inflated arrays is needed.
    """
    N, H, W, C = feat.shape
    h = (H - k) // s + 1
    w = (W - k) // s + 1
    L = h * w
    NL = N * L

    kk = jnp.arange(k * k)
    ky = kk // k
    kx = kk % k
    ll = jnp.arange(NL)
    n = ll // L
    rem = ll % L
    by = rem // w
    bx = rem % w

    r = by[None, :] * s + ky[:, None]                          # (K2, NL)
    c = bx[None, :] * s + kx[:, None]                          # (K2, NL)
    nn = jnp.broadcast_to(n[None, :], r.shape)                 # (K2, NL)

    ch = jnp.arange(C)
    feat_l = feat[nn[:, None, :], r[:, None, :], c[:, None, :], ch[None, :, None]]
    d2 = jnp.arange(flow.shape[-1])
    flow_l = flow[nn[None, :, :], r[None, :, :], c[None, :, :], d2[:, None, None]]
    sal_l = saliency[nn, r, c, 0]
    return sal_l, feat_l, flow_l, h, w


def _unfold_nhwc(x, k, s):
    """F.unfold equivalent for NHWC tensors -> (N, h*w, k*k, C) (reference)."""
    N, H, W, C = x.shape
    h = (H - k) // s + 1
    w = (W - k) // s + 1
    yy = (jnp.arange(h) * s)[:, None, None, None] + jnp.arange(k)[None, None, :, None]
    xx = (jnp.arange(w) * s)[None, :, None, None] + jnp.arange(k)[None, None, None, :]
    patches = x[:, yy, xx, :]                    # (N, h, w, k, k, C)
    return patches.reshape(N, h * w, k * k, C), h, w


def _default_lane_batch():
    # 128-MiB-VMEM parts (v5e/v6e): bigger tiles amortize the ~0.35us per-step
    # overhead and give full-size DMAs.  64-MiB parts (v7x): stay at 512.
    try:
        info = pltpu.get_tpu_info()
        if getattr(info, "vmem_capacity_bytes", 0) >= 100 * (1 << 20):
            return 1024
    except Exception:
        pass
    return 512


def flow_loss(feat, flow, max_norm, *, lane_batch=None):
    """feat: (N, H, W, C+1) (last channel = saliency), flow: (N, H, W, 2)."""
    if lane_batch is None:
        lane_batch = _default_lane_batch()

    N, H, W, Cp1 = feat.shape
    C = Cp1 - 1
    k, s = KERNEL_SIZE, STRIDE
    K2 = k * k

    saliency = lax.stop_gradient(feat[..., -1:])               # (N, H, W, 1)
    feat = feat[..., :-1]                                       # (N, H, W, C)

    # Channel padding so the C-chunk grid axis tiles evenly; zero channels
    # contribute nothing to the anchor dot products.
    C_pad8 = _round_up(C, 8)
    tC = min(128, C_pad8)
    C_pad = _round_up(C_pad8, tC)
    if C_pad != C:
        feat = jnp.pad(feat, ((0, 0), (0, 0), (0, 0), (0, C_pad - C)))
    num_c = C_pad // tC

    sal_l, feat_l, flow_l, h, w = _extract_blocks_lane_major(feat, flow, saliency, k, s)
    L = h * w
    NL = N * L

    # Lane batch: multiple of 128; prefer >= 2 tiles when possible so the
    # "parallel" grid axis can shard across v7x's two TensorCores.
    nl128 = _round_up(NL, 128)
    B = min(_round_up(lane_batch, 128), nl128)
    if nl128 >= 256 and nl128 // B < 2:
        B = _round_up(nl128 // 2, 128)
    NL_pad = _round_up(NL, B)
    num_tiles = NL_pad // B

    pad = NL_pad - NL
    if pad:
        # Zero-padded blocks are "static" (zero anchor flow) -> zero weight;
        # they are sliced away below anyway.
        feat_l = jnp.pad(feat_l, ((0, 0), (0, 0), (0, pad)))
        flow_l = jnp.pad(flow_l, ((0, 0), (0, 0), (0, pad)))
        sal_l = jnp.pad(sal_l, ((0, 0), (0, pad)))

    max_norm = jnp.asarray(max_norm, jnp.float32)
    sigma2 = (RADIUS * max_norm) ** 2
    scalars = jnp.stack(
        [1.0 / (2.0 * sigma2 + 1e-12),
         (STATIC_THRESHOLD * max_norm) ** 2]).astype(jnp.float32)

    grid_spec = pltpu.PrefetchScalarGridSpec(
        num_scalar_prefetch=1,
        grid=(num_tiles, num_c),
        in_specs=[
            pl.BlockSpec((K2, B), lambda i, c, sc: (0, i)),
            pl.BlockSpec((K2, tC, B), lambda i, c, sc: (0, c, i)),
            pl.BlockSpec((2, K2, B), lambda i, c, sc: (0, 0, i)),
        ],
        out_specs=pl.BlockSpec((2, B), lambda i, c, sc: (0, i)),
        scratch_shapes=[pltpu.VMEM((K2, B), jnp.float32)],
    )

    # VMEM budget: double-buffered tiles + scratch + working set, with
    # headroom, clamped to 64 MiB (v7x physical limit).
    in_bytes = (2 * K2 * B * sal_l.dtype.itemsize
                + 2 * K2 * tC * B * feat_l.dtype.itemsize
                + 2 * 2 * K2 * B * flow_l.dtype.itemsize)
    out_bytes = 2 * 2 * B * 4
    scratch_bytes = K2 * B * 4
    work_bytes = (2 * tC + 8 * K2 + 16) * B * 4
    vmem_limit = int(min(64 * (1 << 20),
                         max(32 * (1 << 20),
                             2 * (in_bytes + out_bytes + scratch_bytes + work_bytes))))

    cost = pl.CostEstimate(
        flops=int(5 * K2 * C_pad * NL_pad + 30 * K2 * NL_pad),
        transcendentals=int(3 * K2 * NL_pad),
        bytes_accessed=int(sal_l.size * sal_l.dtype.itemsize
                           + feat_l.size * feat_l.dtype.itemsize
                           + flow_l.size * flow_l.dtype.itemsize
                           + 2 * NL_pad * 4),
    )

    out = pl.pallas_call(
        _flowloss_kernel,
        out_shape=jax.ShapeDtypeStruct((2, NL_pad), jnp.float32),
        grid_spec=grid_spec,
        compiler_params=pltpu.CompilerParams(
            dimension_semantics=("parallel", "arbitrary"),
            vmem_limit_bytes=vmem_limit),
        cost_estimate=cost,
    )(scalars, sal_l, feat_l, flow_l)

    loss_blk = out[0, :NL].reshape(N, L)
    w_blk = out[1, :NL].reshape(N, L)

    # 'norm' mode: per-image weight normalization, weighted sum, nan_to_num, mean.
    flow_w = w_blk / (jnp.sum(w_blk, axis=1, keepdims=True) + 1e-6)
    per_image = jnp.sum(loss_blk * flow_w, axis=1)
    return jnp.nan_to_num(per_image).mean()


# --------------------------- pure-JAX reference -------------------------------
def _flow_loss_ref(feat, flow, max_norm):
    N, H, W, Cp1 = feat.shape
    C = Cp1 - 1
    k, s = KERNEL_SIZE, STRIDE
    K2 = k * k
    saliency = feat[..., -1:]
    feat = feat[..., :-1]
    feat_blk, h, w = _unfold_nhwc(feat, k, s)
    flow_blk, _, _ = _unfold_nhwc(flow, k, s)
    sal_blk, _, _ = _unfold_nhwc(saliency, k, s)
    L = h * w
    NL = N * L
    feat_b = feat_blk.reshape(NL, K2, C).astype(jnp.float32)
    flow_b = flow_blk.reshape(NL, K2, 2).astype(jnp.float32)
    sal_b = sal_blk.reshape(NL, K2).astype(jnp.float32)

    amax = jnp.argmax(sal_b, axis=1)
    onehot = jax.nn.one_hot(amax, K2, dtype=jnp.float32)
    anchor_feat = jnp.einsum('nk,nkc->nc', onehot, feat_b)
    feat_grid = jnp.einsum('nkc,nc->nk', feat_b, anchor_feat)
    anchor_flow = jnp.einsum('nk,nkd->nd', onehot, flow_b)
    diff = flow_b - anchor_flow[:, None, :]
    dist2 = jnp.sum(diff * diff, axis=-1)
    sigma2 = (RADIUS * max_norm) ** 2
    flow_grid = jnp.exp(-dist2 / (2.0 * sigma2 + 1e-12))
    anchor_norm = jnp.sqrt(jnp.sum(anchor_flow ** 2, axis=-1, keepdims=True))
    flow_grid = jnp.where(anchor_norm < STATIC_THRESHOLD * max_norm, 0.0, flow_grid)

    p_label = jax.nn.softmax(flow_grid / FLOW_TEMP, axis=-1)
    log_p = jax.nn.log_softmax(feat_grid / FLOW_TEMP, axis=-1)
    loss = -jnp.sum(p_label * log_p, axis=-1).reshape(N, L)
    wgt = jnp.maximum(flow_grid.mean(-1) - LOSS_WEIGHT_MARGIN, 0.0).reshape(N, L)
    flow_w = wgt / (wgt.sum(1, keepdims=True) + 1e-6)
    per_image = jnp.sum(loss * flow_w, axis=1)
    return jnp.nan_to_num(per_image).mean()


# --------------------------------- main --------------------------------------
if __name__ == "__main__":
    key = jax.random.PRNGKey(0)
    kf, kw = jax.random.split(key)

    N, H, W, C = 2, 16, 16, 32
    feat = jax.random.normal(kf, (N, H, W, C + 1), jnp.float32)   # last ch = saliency
    flow = jax.random.normal(kw, (N, H, W, 2), jnp.float32) * 2.0
    max_norm = jnp.max(jnp.sqrt(jnp.sum(flow ** 2, axis=-1)))

    out = flow_loss(feat, flow, max_norm)
    jax.block_until_ready(out)

    ref = _flow_loss_ref(feat, flow, max_norm)
    assert jnp.allclose(out, ref, rtol=1e-2, atol=1e-3), (float(out), float(ref))

    print("KERNEL_OK")
</pallas_src>

<mosaic_0001>
module attributes {stable_mosaic.version = 11 : i64} {
  func.func @_flowloss_kernel(%arg0: i32, %arg1: i32, %arg2: memref<2xf32, #tpu.memory_space<smem>>, %arg3: memref<25x128xf32, #tpu.memory_space<vmem>>, %arg4: memref<25x32x128xf32, #tpu.memory_space<vmem>>, %arg5: memref<2x25x128xf32, #tpu.memory_space<vmem>>, %arg6: memref<2x128xf32, #tpu.memory_space<vmem>>, %arg7: memref<25x128xf32, #tpu.memory_space<vmem>>) attributes {dimension_semantics = [#tpu.dimension_semantics<parallel>, #tpu.dimension_semantics<arbitrary>], iteration_bounds = array<i64: 1, 1>, scalar_prefetch = 1 : i64, scratch_operands = 1 : i64, tpu.core_type = #tpu.core_type<tc>, window_params = [{transform_indices = @transform_0, window_bounds = array<i64: 25, 128>}, {transform_indices = @transform_1, window_bounds = array<i64: 25, 32, 128>}, {transform_indices = @transform_2, window_bounds = array<i64: 2, 25, 128>}, {transform_indices = @transform_3, window_bounds = array<i64: 2, 128>}]} {
    %c0 = arith.constant 0 : index
    %0 = memref.load %arg2[%c0] : memref<2xf32, #tpu.memory_space<smem>>
    %c1 = arith.constant 1 : index
    %1 = memref.load %arg2[%c1] : memref<2xf32, #tpu.memory_space<smem>>
    %c0_0 = arith.constant 0 : index
    %c0_1 = arith.constant 0 : index
    %2 = vector.load %arg3[%c0_0, %c0_1] : memref<25x128xf32, #tpu.memory_space<vmem>>, vector<25x128xf32>
    %3 = tpu.iota {dimensions = array<i32: 0>} : vector<25x128xi32>
    %cst = arith.constant dense<0xFF800000> : vector<128xf32>
    %4 = vector.multi_reduction <maximumf>, %2, %cst [0] : vector<25x128xf32> to vector<128xf32>
    %5 = vector.shape_cast %4 : vector<128xf32> to vector<1x128xf32>
    %6 = vector.broadcast %5 : vector<1x128xf32> to vector<25x128xf32>
    %7 = arith.cmpf oge, %2, %6 : vector<25x128xf32>
    %c25_i32 = arith.constant 25 : i32
    %8 = vector.broadcast %c25_i32 : i32 to vector<25x128xi32>
    %9 = arith.select %7, %3, %8 : vector<25x128xi1>, vector<25x128xi32>
    %cst_2 = arith.constant dense<2147483647> : vector<128xi32>
    %10 = vector.multi_reduction <minsi>, %9, %cst_2 [0] : vector<25x128xi32> to vector<128xi32>
    %11 = vector.shape_cast %10 : vector<128xi32> to vector<1x128xi32>
    %c0_3 = arith.constant 0 : index
    %c0_4 = arith.constant 0 : index
    %c0_5 = arith.constant 0 : index
    %12 = vector.load %arg4[%c0_3, %c0_4, %c0_5] : memref<25x32x128xf32, #tpu.memory_space<vmem>>, vector<1x32x128xf32>
    %13 = vector.shape_cast %12 : vector<1x32x128xf32> to vector<32x128xf32>
    %c1_i32 = arith.constant 1 : i32
    %14 = vector.broadcast %c1_i32 : i32 to vector<1x128xi32>
    %15 = arith.cmpi eq, %11, %14 : vector<1x128xi32>
    %c1_6 = arith.constant 1 : index
    %c0_7 = arith.constant 0 : index
    %c0_8 = arith.constant 0 : index
    %16 = vector.load %arg4[%c1_6, %c0_7, %c0_8] : memref<25x32x128xf32, #tpu.memory_space<vmem>>, vector<1x32x128xf32>
    %17 = vector.shape_cast %16 : vector<1x32x128xf32> to vector<32x128xf32>
    %18 = vector.shape_cast %15 : vector<1x128xi1> to vector<1x128xi1>
    %19 = vector.broadcast %18 : vector<1x128xi1> to vector<32x128xi1>
    %20 = arith.select %19, %17, %13 : vector<32x128xi1>, vector<32x128xf32>
    %c2_i32 = arith.constant 2 : i32
    %21 = vector.broadcast %c2_i32 : i32 to vector<1x128xi32>
    %22 = arith.cmpi eq, %11, %21 : vector<1x128xi32>
    %c2 = arith.constant 2 : index
    %c0_9 = arith.constant 0 : index
    %c0_10 = arith.constant 0 : index
    %23 = vector.load %arg4[%c2, %c0_9, %c0_10] : memref<25x32x128xf32, #tpu.memory_space<vmem>>, vector<1x32x128xf32>
    %24 = vector.shape_cast %23 : vector<1x32x128xf32> to vector<32x128xf32>
    %25 = vector.shape_cast %22 : vector<1x128xi1> to vector<1x128xi1>
    %26 = vector.broadcast %25 : vector<1x128xi1> to vector<32x128xi1>
    %27 = arith.select %26, %24, %20 : vector<32x128xi1>, vector<32x128xf32>
    %c3_i32 = arith.constant 3 : i32
    %28 = vector.broadcast %c3_i32 : i32 to vector<1x128xi32>
    %29 = arith.cmpi eq, %11, %28 : vector<1x128xi32>
    %c3 = arith.constant 3 : index
    %c0_11 = arith.constant 0 : index
    %c0_12 = arith.constant 0 : index
    %30 = vector.load %arg4[%c3, %c0_11, %c0_12] : memref<25x32x128xf32, #tpu.memory_space<vmem>>, vector<1x32x128xf32>
    %31 = vector.shape_cast %30 : vector<1x32x128xf32> to vector<32x128xf32>
    %32 = vector.shape_cast %29 : vector<1x128xi1> to vector<1x128xi1>
    %33 = vector.broadcast %32 : vector<1x128xi1> to vector<32x128xi1>
    %34 = arith.select %33, %31, %27 : vector<32x128xi1>, vector<32x128xf32>
    %c4_i32 = arith.constant 4 : i32
    %35 = vector.broadcast %c4_i32 : i32 to vector<1x128xi32>
    %36 = arith.cmpi eq, %11, %35 : vector<1x128xi32>
    %c4 = arith.constant 4 : index
    %c0_13 = arith.constant 0 : index
    %c0_14 = arith.constant 0 : index
    %37 = vector.load %arg4[%c4, %c0_13, %c0_14] : memref<25x32x128xf32, #tpu.memory_space<vmem>>, vector<1x32x128xf32>
    %38 = vector.shape_cast %37 : vector<1x32x128xf32> to vector<32x128xf32>
    %39 = vector.shape_cast %36 : vector<1x128xi1> to vector<1x128xi1>
    %40 = vector.broadcast %39 : vector<1x128xi1> to vector<32x128xi1>
    %41 = arith.select %40, %38, %34 : vector<32x128xi1>, vector<32x128xf32>
    %c5_i32 = arith.constant 5 : i32
    %42 = vector.broadcast %c5_i32 : i32 to vector<1x128xi32>
    %43 = arith.cmpi eq, %11, %42 : vector<1x128xi32>
    %c5 = arith.constant 5 : index
    %c0_15 = arith.constant 0 : index
    %c0_16 = arith.constant 0 : index
    %44 = vector.load %arg4[%c5, %c0_15, %c0_16] : memref<25x32x128xf32, #tpu.memory_space<vmem>>, vector<1x32x128xf32>
    %45 = vector.shape_cast %44 : vector<1x32x128xf32> to vector<32x128xf32>
    %46 = vector.shape_cast %43 : vector<1x128xi1> to vector<1x128xi1>
    %47 = vector.broadcast %46 : vector<1x128xi1> to vector<32x128xi1>
    %48 = arith.select %47, %45, %41 : vector<32x128xi1>, vector<32x128xf32>
    %c6_i32 = arith.constant 6 : i32
    %49 = vector.broadcast %c6_i32 : i32 to vector<1x128xi32>
    %50 = arith.cmpi eq, %11, %49 : vector<1x128xi32>
    %c6 = arith.constant 6 : index
    %c0_17 = arith.constant 0 : index
    %c0_18 = arith.constant 0 : index
    %51 = vector.load %arg4[%c6, %c0_17, %c0_18] : memref<25x32x128xf32, #tpu.memory_space<vmem>>, vector<1x32x128xf32>
    %52 = vector.shape_cast %51 : vector<1x32x128xf32> to vector<32x128xf32>
    %53 = vector.shape_cast %50 : vector<1x128xi1> to vector<1x128xi1>
    %54 = vector.broadcast %53 : vector<1x128xi1> to vector<32x128xi1>
    %55 = arith.select %54, %52, %48 : vector<32x128xi1>, vector<32x128xf32>
    %c7_i32 = arith.constant 7 : i32
    %56 = vector.broadcast %c7_i32 : i32 to vector<1x128xi32>
    %57 = arith.cmpi eq, %11, %56 : vector<1x128xi32>
    %c7 = arith.constant 7 : index
    %c0_19 = arith.constant 0 : index
    %c0_20 = arith.constant 0 : index
    %58 = vector.load %arg4[%c7, %c0_19, %c0_20] : memref<25x32x128xf32, #tpu.memory_space<vmem>>, vector<1x32x128xf32>
    %59 = vector.shape_cast %58 : vector<1x32x128xf32> to vector<32x128xf32>
    %60 = vector.shape_cast %57 : vector<1x128xi1> to vector<1x128xi1>
    %61 = vector.broadcast %60 : vector<1x128xi1> to vector<32x128xi1>
    %62 = arith.select %61, %59, %55 : vector<32x128xi1>, vector<32x128xf32>
    %c8_i32 = arith.constant 8 : i32
    %63 = vector.broadcast %c8_i32 : i32 to vector<1x128xi32>
    %64 = arith.cmpi eq, %11, %63 : vector<1x128xi32>
    %c8 = arith.constant 8 : index
    %c0_21 = arith.constant 0 : index
    %c0_22 = arith.constant 0 : index
    %65 = vector.load %arg4[%c8, %c0_21, %c0_22] : memref<25x32x128xf32, #tpu.memory_space<vmem>>, vector<1x32x128xf32>
    %66 = vector.shape_cast %65 : vector<1x32x128xf32> to vector<32x128xf32>
    %67 = vector.shape_cast %64 : vector<1x128xi1> to vector<1x128xi1>
    %68 = vector.broadcast %67 : vector<1x128xi1> to vector<32x128xi1>
    %69 = arith.select %68, %66, %62 : vector<32x128xi1>, vector<32x128xf32>
    %c9_i32 = arith.constant 9 : i32
    %70 = vector.broadcast %c9_i32 : i32 to vector<1x128xi32>
    %71 = arith.cmpi eq, %11, %70 : vector<1x128xi32>
    %c9 = arith.constant 9 : index
    %c0_23 = arith.constant 0 : index
    %c0_24 = arith.constant 0 : index
    %72 = vector.load %arg4[%c9, %c0_23, %c0_24] : memref<25x32x128xf32, #tpu.memory_space<vmem>>, vector<1x32x128xf32>
    %73 = vector.shape_cast %72 : vector<1x32x128xf32> to vector<32x128xf32>
    %74 = vector.shape_cast %71 : vector<1x128xi1> to vector<1x128xi1>
    %75 = vector.broadcast %74 : vector<1x128xi1> to vector<32x128xi1>
    %76 = arith.select %75, %73, %69 : vector<32x128xi1>, vector<32x128xf32>
    %c10_i32 = arith.constant 10 : i32
    %77 = vector.broadcast %c10_i32 : i32 to vector<1x128xi32>
    %78 = arith.cmpi eq, %11, %77 : vector<1x128xi32>
    %c10 = arith.constant 10 : index
    %c0_25 = arith.constant 0 : index
    %c0_26 = arith.constant 0 : index
    %79 = vector.load %arg4[%c10, %c0_25, %c0_26] : memref<25x32x128xf32, #tpu.memory_space<vmem>>, vector<1x32x128xf32>
    %80 = vector.shape_cast %79 : vector<1x32x128xf32> to vector<32x128xf32>
    %81 = vector.shape_cast %78 : vector<1x128xi1> to vector<1x128xi1>
    %82 = vector.broadcast %81 : vector<1x128xi1> to vector<32x128xi1>
    %83 = arith.select %82, %80, %76 : vector<32x128xi1>, vector<32x128xf32>
    %c11_i32 = arith.constant 11 : i32
    %84 = vector.broadcast %c11_i32 : i32 to vector<1x128xi32>
    %85 = arith.cmpi eq, %11, %84 : vector<1x128xi32>
    %c11 = arith.constant 11 : index
    %c0_27 = arith.constant 0 : index
    %c0_28 = arith.constant 0 : index
    %86 = vector.load %arg4[%c11, %c0_27, %c0_28] : memref<25x32x128xf32, #tpu.memory_space<vmem>>, vector<1x32x128xf32>
    %87 = vector.shape_cast %86 : vector<1x32x128xf32> to vector<32x128xf32>
    %88 = vector.shape_cast %85 : vector<1x128xi1> to vector<1x128xi1>
    %89 = vector.broadcast %88 : vector<1x128xi1> to vector<32x128xi1>
    %90 = arith.select %89, %87, %83 : vector<32x128xi1>, vector<32x128xf32>
    %c12_i32 = arith.constant 12 : i32
    %91 = vector.broadcast %c12_i32 : i32 to vector<1x128xi32>
    %92 = arith.cmpi eq, %11, %91 : vector<1x128xi32>
    %c12 = arith.constant 12 : index
    %c0_29 = arith.constant 0 : index
    %c0_30 = arith.constant 0 : index
    %93 = vector.load %arg4[%c12, %c0_29, %c0_30] : memref<25x32x128xf32, #tpu.memory_space<vmem>>, vector<1x32x128xf32>
    %94 = vector.shape_cast %93 : vector<1x32x128xf32> to vector<32x128xf32>
    %95 = vector.shape_cast %92 : vector<1x128xi1> to vector<1x128xi1>
    %96 = vector.broadcast %95 : vector<1x128xi1> to vector<32x128xi1>
    %97 = arith.select %96, %94, %90 : vector<32x128xi1>, vector<32x128xf32>
    %c13_i32 = arith.constant 13 : i32
    %98 = vector.broadcast %c13_i32 : i32 to vector<1x128xi32>
    %99 = arith.cmpi eq, %11, %98 : vector<1x128xi32>
    %c13 = arith.constant 13 : index
    %c0_31 = arith.constant 0 : index
    %c0_32 = arith.constant 0 : index
    %100 = vector.load %arg4[%c13, %c0_31, %c0_32] : memref<25x32x128xf32, #tpu.memory_space<vmem>>, vector<1x32x128xf32>
    %101 = vector.shape_cast %100 : vector<1x32x128xf32> to vector<32x128xf32>
    %102 = vector.shape_cast %99 : vector<1x128xi1> to vector<1x128xi1>
    %103 = vector.broadcast %102 : vector<1x128xi1> to vector<32x128xi1>
    %104 = arith.select %103, %101, %97 : vector<32x128xi1>, vector<32x128xf32>
    %c14_i32 = arith.constant 14 : i32
    %105 = vector.broadcast %c14_i32 : i32 to vector<1x128xi32>
    %106 = arith.cmpi eq, %11, %105 : vector<1x128xi32>
    %c14 = arith.constant 14 : index
    %c0_33 = arith.constant 0 : index
    %c0_34 = arith.constant 0 : index
    %107 = vector.load %arg4[%c14, %c0_33, %c0_34] : memref<25x32x128xf32, #tpu.memory_space<vmem>>, vector<1x32x128xf32>
    %108 = vector.shape_cast %107 : vector<1x32x128xf32> to vector<32x128xf32>
    %109 = vector.shape_cast %106 : vector<1x128xi1> to vector<1x128xi1>
    %110 = vector.broadcast %109 : vector<1x128xi1> to vector<32x128xi1>
    %111 = arith.select %110, %108, %104 : vector<32x128xi1>, vector<32x128xf32>
    %c15_i32 = arith.constant 15 : i32
    %112 = vector.broadcast %c15_i32 : i32 to vector<1x128xi32>
    %113 = arith.cmpi eq, %11, %112 : vector<1x128xi32>
    %c15 = arith.constant 15 : index
    %c0_35 = arith.constant 0 : index
    %c0_36 = arith.constant 0 : index
    %114 = vector.load %arg4[%c15, %c0_35, %c0_36] : memref<25x32x128xf32, #tpu.memory_space<vmem>>, vector<1x32x128xf32>
    %115 = vector.shape_cast %114 : vector<1x32x128xf32> to vector<32x128xf32>
    %116 = vector.shape_cast %113 : vector<1x128xi1> to vector<1x128xi1>
    %117 = vector.broadcast %116 : vector<1x128xi1> to vector<32x128xi1>
    %118 = arith.select %117, %115, %111 : vector<32x128xi1>, vector<32x128xf32>
    %c16_i32 = arith.constant 16 : i32
    %119 = vector.broadcast %c16_i32 : i32 to vector<1x128xi32>
    %120 = arith.cmpi eq, %11, %119 : vector<1x128xi32>
    %c16 = arith.constant 16 : index
    %c0_37 = arith.constant 0 : index
    %c0_38 = arith.constant 0 : index
    %121 = vector.load %arg4[%c16, %c0_37, %c0_38] : memref<25x32x128xf32, #tpu.memory_space<vmem>>, vector<1x32x128xf32>
    %122 = vector.shape_cast %121 : vector<1x32x128xf32> to vector<32x128xf32>
    %123 = vector.shape_cast %120 : vector<1x128xi1> to vector<1x128xi1>
    %124 = vector.broadcast %123 : vector<1x128xi1> to vector<32x128xi1>
    %125 = arith.select %124, %122, %118 : vector<32x128xi1>, vector<32x128xf32>
    %c17_i32 = arith.constant 17 : i32
    %126 = vector.broadcast %c17_i32 : i32 to vector<1x128xi32>
    %127 = arith.cmpi eq, %11, %126 : vector<1x128xi32>
    %c17 = arith.constant 17 : index
    %c0_39 = arith.constant 0 : index
    %c0_40 = arith.constant 0 : index
    %128 = vector.load %arg4[%c17, %c0_39, %c0_40] : memref<25x32x128xf32, #tpu.memory_space<vmem>>, vector<1x32x128xf32>
    %129 = vector.shape_cast %128 : vector<1x32x128xf32> to vector<32x128xf32>
    %130 = vector.shape_cast %127 : vector<1x128xi1> to vector<1x128xi1>
    %131 = vector.broadcast %130 : vector<1x128xi1> to vector<32x128xi1>
    %132 = arith.select %131, %129, %125 : vector<32x128xi1>, vector<32x128xf32>
    %c18_i32 = arith.constant 18 : i32
    %133 = vector.broadcast %c18_i32 : i32 to vector<1x128xi32>
    %134 = arith.cmpi eq, %11, %133 : vector<1x128xi32>
    %c18 = arith.constant 18 : index
    %c0_41 = arith.constant 0 : index
    %c0_42 = arith.constant 0 : index
    %135 = vector.load %arg4[%c18, %c0_41, %c0_42] : memref<25x32x128xf32, #tpu.memory_space<vmem>>, vector<1x32x128xf32>
    %136 = vector.shape_cast %135 : vector<1x32x128xf32> to vector<32x128xf32>
    %137 = vector.shape_cast %134 : vector<1x128xi1> to vector<1x128xi1>
    %138 = vector.broadcast %137 : vector<1x128xi1> to vector<32x128xi1>
    %139 = arith.select %138, %136, %132 : vector<32x128xi1>, vector<32x128xf32>
    %c19_i32 = arith.constant 19 : i32
    %140 = vector.broadcast %c19_i32 : i32 to vector<1x128xi32>
    %141 = arith.cmpi eq, %11, %140 : vector<1x128xi32>
    %c19 = arith.constant 19 : index
    %c0_43 = arith.constant 0 : index
    %c0_44 = arith.constant 0 : index
    %142 = vector.load %arg4[%c19, %c0_43, %c0_44] : memref<25x32x128xf32, #tpu.memory_space<vmem>>, vector<1x32x128xf32>
    %143 = vector.shape_cast %142 : vector<1x32x128xf32> to vector<32x128xf32>
    %144 = vector.shape_cast %141 : vector<1x128xi1> to vector<1x128xi1>
    %145 = vector.broadcast %144 : vector<1x128xi1> to vector<32x128xi1>
    %146 = arith.select %145, %143, %139 : vector<32x128xi1>, vector<32x128xf32>
    %c20_i32 = arith.constant 20 : i32
    %147 = vector.broadcast %c20_i32 : i32 to vector<1x128xi32>
    %148 = arith.cmpi eq, %11, %147 : vector<1x128xi32>
    %c20 = arith.constant 20 : index
    %c0_45 = arith.constant 0 : index
    %c0_46 = arith.constant 0 : index
    %149 = vector.load %arg4[%c20, %c0_45, %c0_46] : memref<25x32x128xf32, #tpu.memory_space<vmem>>, vector<1x32x128xf32>
    %150 = vector.shape_cast %149 : vector<1x32x128xf32> to vector<32x128xf32>
    %151 = vector.shape_cast %148 : vector<1x128xi1> to vector<1x128xi1>
    %152 = vector.broadcast %151 : vector<1x128xi1> to vector<32x128xi1>
    %153 = arith.select %152, %150, %146 : vector<32x128xi1>, vector<32x128xf32>
    %c21_i32 = arith.constant 21 : i32
    %154 = vector.broadcast %c21_i32 : i32 to vector<1x128xi32>
    %155 = arith.cmpi eq, %11, %154 : vector<1x128xi32>
    %c21 = arith.constant 21 : index
    %c0_47 = arith.constant 0 : index
    %c0_48 = arith.constant 0 : index
    %156 = vector.load %arg4[%c21, %c0_47, %c0_48] : memref<25x32x128xf32, #tpu.memory_space<vmem>>, vector<1x32x128xf32>
    %157 = vector.shape_cast %156 : vector<1x32x128xf32> to vector<32x128xf32>
    %158 = vector.shape_cast %155 : vector<1x128xi1> to vector<1x128xi1>
    %159 = vector.broadcast %158 : vector<1x128xi1> to vector<32x128xi1>
    %160 = arith.select %159, %157, %153 : vector<32x128xi1>, vector<32x128xf32>
    %c22_i32 = arith.constant 22 : i32
    %161 = vector.broadcast %c22_i32 : i32 to vector<1x128xi32>
    %162 = arith.cmpi eq, %11, %161 : vector<1x128xi32>
    %c22 = arith.constant 22 : index
    %c0_49 = arith.constant 0 : index
    %c0_50 = arith.constant 0 : index
    %163 = vector.load %arg4[%c22, %c0_49, %c0_50] : memref<25x32x128xf32, #tpu.memory_space<vmem>>, vector<1x32x128xf32>
    %164 = vector.shape_cast %163 : vector<1x32x128xf32> to vector<32x128xf32>
    %165 = vector.shape_cast %162 : vector<1x128xi1> to vector<1x128xi1>
    %166 = vector.broadcast %165 : vector<1x128xi1> to vector<32x128xi1>
    %167 = arith.select %166, %164, %160 : vector<32x128xi1>, vector<32x128xf32>
    %c23_i32 = arith.constant 23 : i32
    %168 = vector.broadcast %c23_i32 : i32 to vector<1x128xi32>
    %169 = arith.cmpi eq, %11, %168 : vector<1x128xi32>
    %c23 = arith.constant 23 : index
    %c0_51 = arith.constant 0 : index
    %c0_52 = arith.constant 0 : index
    %170 = vector.load %arg4[%c23, %c0_51, %c0_52] : memref<25x32x128xf32, #tpu.memory_space<vmem>>, vector<1x32x128xf32>
    %171 = vector.shape_cast %170 : vector<1x32x128xf32> to vector<32x128xf32>
    %172 = vector.shape_cast %169 : vector<1x128xi1> to vector<1x128xi1>
    %173 = vector.broadcast %172 : vector<1x128xi1> to vector<32x128xi1>
    %174 = arith.select %173, %171, %167 : vector<32x128xi1>, vector<32x128xf32>
    %c24_i32 = arith.constant 24 : i32
    %175 = vector.broadcast %c24_i32 : i32 to vector<1x128xi32>
    %176 = arith.cmpi eq, %11, %175 : vector<1x128xi32>
    %c24 = arith.constant 24 : index
    %c0_53 = arith.constant 0 : index
    %c0_54 = arith.constant 0 : index
    %177 = vector.load %arg4[%c24, %c0_53, %c0_54] : memref<25x32x128xf32, #tpu.memory_space<vmem>>, vector<1x32x128xf32>
    %178 = vector.shape_cast %177 : vector<1x32x128xf32> to vector<32x128xf32>
    %179 = vector.shape_cast %176 : vector<1x128xi1> to vector<1x128xi1>
    %180 = vector.broadcast %179 : vector<1x128xi1> to vector<32x128xi1>
    %181 = arith.select %180, %178, %174 : vector<32x128xi1>, vector<32x128xf32>
    %c0_55 = arith.constant 0 : index
    %c0_56 = arith.constant 0 : index
    %c0_57 = arith.constant 0 : index
    %182 = vector.load %arg4[%c0_55, %c0_56, %c0_57] : memref<25x32x128xf32, #tpu.memory_space<vmem>>, vector<1x32x128xf32>
    %183 = vector.shape_cast %182 : vector<1x32x128xf32> to vector<32x128xf32>
    %184 = arith.mulf %183, %181 : vector<32x128xf32>
    %cst_58 = arith.constant dense<0.000000e+00> : vector<128xf32>
    %185 = vector.multi_reduction <add>, %184, %cst_58 [0] : vector<32x128xf32> to vector<128xf32>
    %186 = vector.shape_cast %185 : vector<128xf32> to vector<1x128xf32>
    %c1_59 = arith.constant 1 : index
    %c0_60 = arith.constant 0 : index
    %c0_61 = arith.constant 0 : index
    %187 = vector.load %arg4[%c1_59, %c0_60, %c0_61] : memref<25x32x128xf32, #tpu.memory_space<vmem>>, vector<1x32x128xf32>
    %188 = vector.shape_cast %187 : vector<1x32x128xf32> to vector<32x128xf32>
    %189 = arith.mulf %188, %181 : vector<32x128xf32>
    %cst_62 = arith.constant dense<0.000000e+00> : vector<128xf32>
    %190 = vector.multi_reduction <add>, %189, %cst_62 [0] : vector<32x128xf32> to vector<128xf32>
    %191 = vector.shape_cast %190 : vector<128xf32> to vector<1x128xf32>
    %c2_63 = arith.constant 2 : index
    %c0_64 = arith.constant 0 : index
    %c0_65 = arith.constant 0 : index
    %192 = vector.load %arg4[%c2_63, %c0_64, %c0_65] : memref<25x32x128xf32, #tpu.memory_space<vmem>>, vector<1x32x128xf32>
    %193 = vector.shape_cast %192 : vector<1x32x128xf32> to vector<32x128xf32>
    %194 = arith.mulf %193, %181 : vector<32x128xf32>
    %cst_66 = arith.constant dense<0.000000e+00> : vector<128xf32>
    %195 = vector.multi_reduction <add>, %194, %cst_66 [0] : vector<32x128xf32> to vector<128xf32>
    %196 = vector.shape_cast %195 : vector<128xf32> to vector<1x128xf32>
    %c3_67 = arith.constant 3 : index
    %c0_68 = arith.constant 0 : index
    %c0_69 = arith.constant 0 : index
    %197 = vector.load %arg4[%c3_67, %c0_68, %c0_69] : memref<25x32x128xf32, #tpu.memory_space<vmem>>, vector<1x32x128xf32>
    %198 = vector.shape_cast %197 : vector<1x32x128xf32> to vector<32x128xf32>
    %199 = arith.mulf %198, %181 : vector<32x128xf32>
    %cst_70 = arith.constant dense<0.000000e+00> : vector<128xf32>
    %200 = vector.multi_reduction <add>, %199, %cst_70 [0] : vector<32x128xf32> to vector<128xf32>
    %201 = vector.shape_cast %200 : vector<128xf32> to vector<1x128xf32>
    %c4_71 = arith.constant 4 : index
    %c0_72 = arith.constant 0 : index
    %c0_73 = arith.constant 0 : index
    %202 = vector.load %arg4[%c4_71, %c0_72, %c0_73] : memref<25x32x128xf32, #tpu.memory_space<vmem>>, vector<1x32x128xf32>
    %203 = vector.shape_cast %202 : vector<1x32x128xf32> to vector<32x128xf32>
    %204 = arith.mulf %203, %181 : vector<32x128xf32>
    %cst_74 = arith.constant dense<0.000000e+00> : vector<128xf32>
    %205 = vector.multi_reduction <add>, %204, %cst_74 [0] : vector<32x128xf32> to vector<128xf32>
    %206 = vector.shape_cast %205 : vector<128xf32> to vector<1x128xf32>
    %c5_75 = arith.constant 5 : index
    %c0_76 = arith.constant 0 : index
    %c0_77 = arith.constant 0 : index
    %207 = vector.load %arg4[%c5_75, %c0_76, %c0_77] : memref<25x32x128xf32, #tpu.memory_space<vmem>>, vector<1x32x128xf32>
    %208 = vector.shape_cast %207 : vector<1x32x128xf32> to vector<32x128xf32>
    %209 = arith.mulf %208, %181 : vector<32x128xf32>
    %cst_78 = arith.constant dense<0.000000e+00> : vector<128xf32>
    %210 = vector.multi_reduction <add>, %209, %cst_78 [0] : vector<32x128xf32> to vector<128xf32>
    %211 = vector.shape_cast %210 : vector<128xf32> to vector<1x128xf32>
    %c6_79 = arith.constant 6 : index
    %c0_80 = arith.constant 0 : index
    %c0_81 = arith.constant 0 : index
    %212 = vector.load %arg4[%c6_79, %c0_80, %c0_81] : memref<25x32x128xf32, #tpu.memory_space<vmem>>, vector<1x32x128xf32>
    %213 = vector.shape_cast %212 : vector<1x32x128xf32> to vector<32x128xf32>
    %214 = arith.mulf %213, %181 : vector<32x128xf32>
    %cst_82 = arith.constant dense<0.000000e+00> : vector<128xf32>
    %215 = vector.multi_reduction <add>, %214, %cst_82 [0] : vector<32x128xf32> to vector<128xf32>
    %216 = vector.shape_cast %215 : vector<128xf32> to vector<1x128xf32>
    %c7_83 = arith.constant 7 : index
    %c0_84 = arith.constant 0 : index
    %c0_85 = arith.constant 0 : index
    %217 = vector.load %arg4[%c7_83, %c0_84, %c0_85] : memref<25x32x128xf32, #tpu.memory_space<vmem>>, vector<1x32x128xf32>
    %218 = vector.shape_cast %217 : vector<1x32x128xf32> to vector<32x128xf32>
    %219 = arith.mulf %218, %181 : vector<32x128xf32>
    %cst_86 = arith.constant dense<0.000000e+00> : vector<128xf32>
    %220 = vector.multi_reduction <add>, %219, %cst_86 [0] : vector<32x128xf32> to vector<128xf32>
    %221 = vector.shape_cast %220 : vector<128xf32> to vector<1x128xf32>
    %c8_87 = arith.constant 8 : index
    %c0_88 = arith.constant 0 : index
    %c0_89 = arith.constant 0 : index
    %222 = vector.load %arg4[%c8_87, %c0_88, %c0_89] : memref<25x32x128xf32, #tpu.memory_space<vmem>>, vector<1x32x128xf32>
    %223 = vector.shape_cast %222 : vector<1x32x128xf32> to vector<32x128xf32>
    %224 = arith.mulf %223, %181 : vector<32x128xf32>
    %cst_90 = arith.constant dense<0.000000e+00> : vector<128xf32>
    %225 = vector.multi_reduction <add>, %224, %cst_90 [0] : vector<32x128xf32> to vector<128xf32>
    %226 = vector.shape_cast %225 : vector<128xf32> to vector<1x128xf32>
    %c9_91 = arith.constant 9 : index
    %c0_92 = arith.constant 0 : index
    %c0_93 = arith.constant 0 : index
    %227 = vector.load %arg4[%c9_91, %c0_92, %c0_93] : memref<25x32x128xf32, #tpu.memory_space<vmem>>, vector<1x32x128xf32>
    %228 = vector.shape_cast %227 : vector<1x32x128xf32> to vector<32x128xf32>
    %229 = arith.mulf %228, %181 : vector<32x128xf32>
    %cst_94 = arith.constant dense<0.000000e+00> : vector<128xf32>
    %230 = vector.multi_reduction <add>, %229, %cst_94 [0] : vector<32x128xf32> to vector<128xf32>
    %231 = vector.shape_cast %230 : vector<128xf32> to vector<1x128xf32>
    %c10_95 = arith.constant 10 : index
    %c0_96 = arith.constant 0 : index
    %c0_97 = arith.constant 0 : index
    %232 = vector.load %arg4[%c10_95, %c0_96, %c0_97] : memref<25x32x128xf32, #tpu.memory_space<vmem>>, vector<1x32x128xf32>
    %233 = vector.shape_cast %232 : vector<1x32x128xf32> to vector<32x128xf32>
    %234 = arith.mulf %233, %181 : vector<32x128xf32>
    %cst_98 = arith.constant dense<0.000000e+00> : vector<128xf32>
    %235 = vector.multi_reduction <add>, %234, %cst_98 [0] : vector<32x128xf32> to vector<128xf32>
    %236 = vector.shape_cast %235 : vector<128xf32> to vector<1x128xf32>
    %c11_99 = arith.constant 11 : index
    %c0_100 = arith.constant 0 : index
    %c0_101 = arith.constant 0 : index
    %237 = vector.load %arg4[%c11_99, %c0_100, %c0_101] : memref<25x32x128xf32, #tpu.memory_space<vmem>>, vector<1x32x128xf32>
    %238 = vector.shape_cast %237 : vector<1x32x128xf32> to vector<32x128xf32>
    %239 = arith.mulf %238, %181 : vector<32x128xf32>
    %cst_102 = arith.constant dense<0.000000e+00> : vector<128xf32>
    %240 = vector.multi_reduction <add>, %239, %cst_102 [0] : vector<32x128xf32> to vector<128xf32>
    %241 = vector.shape_cast %240 : vector<128xf32> to vector<1x128xf32>
    %c12_103 = arith.constant 12 : index
    %c0_104 = arith.constant 0 : index
    %c0_105 = arith.constant 0 : index
    %242 = vector.load %arg4[%c12_103, %c0_104, %c0_105] : memref<25x32x128xf32, #tpu.memory_space<vmem>>, vector<1x32x128xf32>
    %243 = vector.shape_cast %242 : vector<1x32x128xf32> to vector<32x128xf32>
    %244 = arith.mulf %243, %181 : vector<32x128xf32>
    %cst_106 = arith.constant dense<0.000000e+00> : vector<128xf32>
    %245 = vector.multi_reduction <add>, %244, %cst_106 [0] : vector<32x128xf32> to vector<128xf32>
    %246 = vector.shape_cast %245 : vector<128xf32> to vector<1x128xf32>
    %c13_107 = arith.constant 13 : index
    %c0_108 = arith.constant 0 : index
    %c0_109 = arith.constant 0 : index
    %247 = vector.load %arg4[%c13_107, %c0_108, %c0_109] : memref<25x32x128xf32, #tpu.memory_space<vmem>>, vector<1x32x128xf32>
    %248 = vector.shape_cast %247 : vector<1x32x128xf32> to vector<32x128xf32>
    %249 = arith.mulf %248, %181 : vector<32x128xf32>
    %cst_110 = arith.constant dense<0.000000e+00> : vector<128xf32>
    %250 = vector.multi_reduction <add>, %249, %cst_110 [0] : vector<32x128xf32> to vector<128xf32>
    %251 = vector.shape_cast %250 : vector<128xf32> to vector<1x128xf32>
    %c14_111 = arith.constant 14 : index
    %c0_112 = arith.constant 0 : index
    %c0_113 = arith.constant 0 : index
    %252 = vector.load %arg4[%c14_111, %c0_112, %c0_113] : memref<25x32x128xf32, #tpu.memory_space<vmem>>, vector<1x32x128xf32>
    %253 = vector.shape_cast %252 : vector<1x32x128xf32> to vector<32x128xf32>
    %254 = arith.mulf %253, %181 : vector<32x128xf32>
    %cst_114 = arith.constant dense<0.000000e+00> : vector<128xf32>
    %255 = vector.multi_reduction <add>, %254, %cst_114 [0] : vector<32x128xf32> to vector<128xf32>
    %256 = vector.shape_cast %255 : vector<128xf32> to vector<1x128xf32>
    %c15_115 = arith.constant 15 : index
    %c0_116 = arith.constant 0 : index
    %c0_117 = arith.constant 0 : index
    %257 = vector.load %arg4[%c15_115, %c0_116, %c0_117] : memref<25x32x128xf32, #tpu.memory_space<vmem>>, vector<1x32x128xf32>
    %258 = vector.shape_cast %257 : vector<1x32x128xf32> to vector<32x128xf32>
    %259 = arith.mulf %258, %181 : vector<32x128xf32>
    %cst_118 = arith.constant dense<0.000000e+00> : vector<128xf32>
    %260 = vector.multi_reduction <add>, %259, %cst_118 [0] : vector<32x128xf32> to vector<128xf32>
    %261 = vector.shape_cast %260 : vector<128xf32> to vector<1x128xf32>
    %c16_119 = arith.constant 16 : index
    %c0_120 = arith.constant 0 : index
    %c0_121 = arith.constant 0 : index
    %262 = vector.load %arg4[%c16_119, %c0_120, %c0_121] : memref<25x32x128xf32, #tpu.memory_space<vmem>>, vector<1x32x128xf32>
    %263 = vector.shape_cast %262 : vector<1x32x128xf32> to vector<32x128xf32>
    %264 = arith.mulf %263, %181 : vector<32x128xf32>
    %cst_122 = arith.constant dense<0.000000e+00> : vector<128xf32>
    %265 = vector.multi_reduction <add>, %264, %cst_122 [0] : vector<32x128xf32> to vector<128xf32>
    %266 = vector.shape_cast %265 : vector<128xf32> to vector<1x128xf32>
    %c17_123 = arith.constant 17 : index
    %c0_124 = arith.constant 0 : index
    %c0_125 = arith.constant 0 : index
    %267 = vector.load %arg4[%c17_123, %c0_124, %c0_125] : memref<25x32x128xf32, #tpu.memory_space<vmem>>, vector<1x32x128xf32>
    %268 = vector.shape_cast %267 : vector<1x32x128xf32> to vector<32x128xf32>
    %269 = arith.mulf %268, %181 : vector<32x128xf32>
    %cst_126 = arith.constant dense<0.000000e+00> : vector<128xf32>
    %270 = vector.multi_reduction <add>, %269, %cst_126 [0] : vector<32x128xf32> to vector<128xf32>
    %271 = vector.shape_cast %270 : vector<128xf32> to vector<1x128xf32>
    %c18_127 = arith.constant 18 : index
    %c0_128 = arith.constant 0 : index
    %c0_129 = arith.constant 0 : index
    %272 = vector.load %arg4[%c18_127, %c0_128, %c0_129] : memref<25x32x128xf32, #tpu.memory_space<vmem>>, vector<1x32x128xf32>
    %273 = vector.shape_cast %272 : vector<1x32x128xf32> to vector<32x128xf32>
    %274 = arith.mulf %273, %181 : vector<32x128xf32>
    %cst_130 = arith.constant dense<0.000000e+00> : vector<128xf32>
    %275 = vector.multi_reduction <add>, %274, %cst_130 [0] : vector<32x128xf32> to vector<128xf32>
    %276 = vector.shape_cast %275 : vector<128xf32> to vector<1x128xf32>
    %c19_131 = arith.constant 19 : index
    %c0_132 = arith.constant 0 : index
    %c0_133 = arith.constant 0 : index
    %277 = vector.load %arg4[%c19_131, %c0_132, %c0_133] : memref<25x32x128xf32, #tpu.memory_space<vmem>>, vector<1x32x128xf32>
    %278 = vector.shape_cast %277 : vector<1x32x128xf32> to vector<32x128xf32>
    %279 = arith.mulf %278, %181 : vector<32x128xf32>
    %cst_134 = arith.constant dense<0.000000e+00> : vector<128xf32>
    %280 = vector.multi_reduction <add>, %279, %cst_134 [0] : vector<32x128xf32> to vector<128xf32>
    %281 = vector.shape_cast %280 : vector<128xf32> to vector<1x128xf32>
    %c20_135 = arith.constant 20 : index
    %c0_136 = arith.constant 0 : index
    %c0_137 = arith.constant 0 : index
    %282 = vector.load %arg4[%c20_135, %c0_136, %c0_137] : memref<25x32x128xf32, #tpu.memory_space<vmem>>, vector<1x32x128xf32>
    %283 = vector.shape_cast %282 : vector<1x32x128xf32> to vector<32x128xf32>
    %284 = arith.mulf %283, %181 : vector<32x128xf32>
    %cst_138 = arith.constant dense<0.000000e+00> : vector<128xf32>
    %285 = vector.multi_reduction <add>, %284, %cst_138 [0] : vector<32x128xf32> to vector<128xf32>
    %286 = vector.shape_cast %285 : vector<128xf32> to vector<1x128xf32>
    %c21_139 = arith.constant 21 : index
    %c0_140 = arith.constant 0 : index
    %c0_141 = arith.constant 0 : index
    %287 = vector.load %arg4[%c21_139, %c0_140, %c0_141] : memref<25x32x128xf32, #tpu.memory_space<vmem>>, vector<1x32x128xf32>
    %288 = vector.shape_cast %287 : vector<1x32x128xf32> to vector<32x128xf32>
    %289 = arith.mulf %288, %181 : vector<32x128xf32>
    %cst_142 = arith.constant dense<0.000000e+00> : vector<128xf32>
    %290 = vector.multi_reduction <add>, %289, %cst_142 [0] : vector<32x128xf32> to vector<128xf32>
    %291 = vector.shape_cast %290 : vector<128xf32> to vector<1x128xf32>
    %c22_143 = arith.constant 22 : index
    %c0_144 = arith.constant 0 : index
    %c0_145 = arith.constant 0 : index
    %292 = vector.load %arg4[%c22_143, %c0_144, %c0_145] : memref<25x32x128xf32, #tpu.memory_space<vmem>>, vector<1x32x128xf32>
    %293 = vector.shape_cast %292 : vector<1x32x128xf32> to vector<32x128xf32>
    %294 = arith.mulf %293, %181 : vector<32x128xf32>
    %cst_146 = arith.constant dense<0.000000e+00> : vector<128xf32>
    %295 = vector.multi_reduction <add>, %294, %cst_146 [0] : vector<32x128xf32> to vector<128xf32>
    %296 = vector.shape_cast %295 : vector<128xf32> to vector<1x128xf32>
    %c23_147 = arith.constant 23 : index
    %c0_148 = arith.constant 0 : index
    %c0_149 = arith.constant 0 : index
    %297 = vector.load %arg4[%c23_147, %c0_148, %c0_149] : memref<25x32x128xf32, #tpu.memory_space<vmem>>, vector<1x32x128xf32>
    %298 = vector.shape_cast %297 : vector<1x32x128xf32> to vector<32x128xf32>
    %299 = arith.mulf %298, %181 : vector<32x128xf32>
    %cst_150 = arith.constant dense<0.000000e+00> : vector<128xf32>
    %300 = vector.multi_reduction <add>, %299, %cst_150 [0] : vector<32x128xf32> to vector<128xf32>
    %301 = vector.shape_cast %300 : vector<128xf32> to vector<1x128xf32>
    %c24_151 = arith.constant 24 : index
    %c0_152 = arith.constant 0 : index
    %c0_153 = arith.constant 0 : index
    %302 = vector.load %arg4[%c24_151, %c0_152, %c0_153] : memref<25x32x128xf32, #tpu.memory_space<vmem>>, vector<1x32x128xf32>
    %303 = vector.shape_cast %302 : vector<1x32x128xf32> to vector<32x128xf32>
    %304 = arith.mulf %303, %181 : vector<32x128xf32>
    %cst_154 = arith.constant dense<0.000000e+00> : vector<128xf32>
    %305 = vector.multi_reduction <add>, %304, %cst_154 [0] : vector<32x128xf32> to vector<128xf32>
    %306 = vector.shape_cast %305 : vector<128xf32> to vector<1x128xf32>
    %307 = tpu.concatenate %186, %191, %196, %201, %206, %211, %216, %221, %226, %231, %236, %241, %246, %251, %256, %261 in 0 : vector<1x128xf32>, vector<1x128xf32>, vector<1x128xf32>, vector<1x128xf32>, vector<1x128xf32>, vector<1x128xf32>, vector<1x128xf32>, vector<1x128xf32>, vector<1x128xf32>, vector<1x128xf32>, vector<1x128xf32>, vector<1x128xf32>, vector<1x128xf32>, vector<1x128xf32>, vector<1x128xf32>, vector<1x128xf32> -> vector<16x128xf32>
    %308 = tpu.concatenate %266, %271, %276, %281, %286, %291, %296, %301, %306 in 0 : vector<1x128xf32>, vector<1x128xf32>, vector<1x128xf32>, vector<1x128xf32>, vector<1x128xf32>, vector<1x128xf32>, vector<1x128xf32>, vector<1x128xf32>, vector<1x128xf32> -> vector<9x128xf32>
    %309 = tpu.concatenate %307, %308 in 0 : vector<16x128xf32>, vector<9x128xf32> -> vector<25x128xf32>
    %c0_i32 = arith.constant 0 : i32
    %310 = arith.cmpi eq, %arg1, %c0_i32 : i32
    %311 = arith.extui %310 : i1 to i32
    %c0_i32_155 = arith.constant 0 : i32
    %312 = arith.cmpi ne, %311, %c0_i32_155 : i32
    scf.if %312 {
      %cst_162 = arith.constant 0.000000e+00 : f32
      %319 = vector.broadcast %cst_162 : f32 to vector<25x128xf32>
      %c0_163 = arith.constant 0 : index
      %c0_164 = arith.constant 0 : index
      %320 = vector.load %arg7[%c0_163, %c0_164] : memref<25x128xf32, #tpu.memory_space<vmem>>, vector<25x128xf32>
      tpu.vector_store %arg7[%c0_163, %c0_164], %319 {strides = array<i32>} : memref<25x128xf32, #tpu.memory_space<vmem>>, vector<25x128xf32>,
    } else {
    }
    %c0_156 = arith.constant 0 : index
    %c0_157 = arith.constant 0 : index
    %313 = vector.load %arg7[%c0_156, %c0_157] : memref<25x128xf32, #tpu.memory_space<vmem>>, vector<25x128xf32>
    %314 = arith.addf %313, %309 : vector<25x128xf32>
    %c0_158 = arith.constant 0 : index
    %c0_159 = arith.constant 0 : index
    %315 = vector.load %arg7[%c0_158, %c0_159] : memref<25x128xf32, #tpu.memory_space<vmem>>, vector<25x128xf32>
    tpu.vector_store %arg7[%c0_158, %c0_159], %314 {strides = array<i32>} : memref<25x128xf32, #tpu.memory_space<vmem>>, vector<25x128xf32>,
    %c0_i32_160 = arith.constant 0 : i32
    %316 = arith.cmpi eq, %arg1, %c0_i32_160 : i32
    %317 = arith.extui %316 : i1 to i32
    %c0_i32_161 = arith.constant 0 : i32
    %318 = arith.cmpi ne, %317, %c0_i32_161 : i32
    scf.if %318 {
      %c0_162 = arith.constant 0 : index
      %c0_163 = arith.constant 0 : index
      %c0_164 = arith.constant 0 : index
      %319 = vector.load %arg5[%c0_162, %c0_163, %c0_164] : memref<2x25x128xf32, #tpu.memory_space<vmem>>, vector<2x25x128xf32>
      %320 = vector.extract_strided_slice %319 {offsets = [0, 0, 0], sizes = [1, 25, 128], strides = [1, 1, 1]} : vector<2x25x128xf32> to vector<1x25x128xf32>
      %321 = vector.shape_cast %320 : vector<1x25x128xf32> to vector<25x128xf32>
      %322 = vector.extract_strided_slice %319 {offsets = [1, 0, 0], sizes = [1, 25, 128], strides = [1, 1, 1]} : vector<2x25x128xf32> to vector<1x25x128xf32>
      %323 = vector.shape_cast %322 : vector<1x25x128xf32> to vector<25x128xf32>
      %324 = vector.broadcast %11 : vector<1x128xi32> to vector<25x128xi32>
      %325 = arith.cmpi eq, %3, %324 : vector<25x128xi32>
      %326 = arith.extui %325 : vector<25x128xi1> to vector<25x128xi32>
      %327 = arith.sitofp %326 : vector<25x128xi32> to vector<25x128xf32>
      %328 = arith.mulf %321, %327 : vector<25x128xf32>
      %cst_165 = arith.constant dense<0.000000e+00> : vector<128xf32>
      %329 = vector.multi_reduction <add>, %328, %cst_165 [0] : vector<25x128xf32> to vector<128xf32>
      %330 = vector.shape_cast %329 : vector<128xf32> to vector<1x128xf32>
      %331 = arith.mulf %323, %327 : vector<25x128xf32>
      %cst_166 = arith.constant dense<0.000000e+00> : vector<128xf32>
      %332 = vector.multi_reduction <add>, %331, %cst_166 [0] : vector<25x128xf32> to vector<128xf32>
      %333 = vector.shape_cast %332 : vector<128xf32> to vector<1x128xf32>
      %334 = vector.broadcast %330 : vector<1x128xf32> to vector<25x128xf32>
      %335 = arith.subf %321, %334 : vector<25x128xf32>
      %336 = vector.broadcast %333 : vector<1x128xf32> to vector<25x128xf32>
      %337 = arith.subf %323, %336 : vector<25x128xf32>
      %338 = arith.mulf %335, %335 : vector<25x128xf32>
      %339 = arith.mulf %337, %337 : vector<25x128xf32>
      %340 = arith.addf %338, %339 : vector<25x128xf32>
      %cst_167 = arith.constant 0.000000e+00 : f32
      %341 = vector.broadcast %cst_167 : f32 to vector<25x128xf32>
      %342 = arith.subf %341, %340 : vector<25x128xf32>
      %343 = vector.broadcast %0 : f32 to vector<25x128xf32>
      %344 = arith.mulf %342, %343 : vector<25x128xf32>
      %345 = math.exp %344 : vector<25x128xf32>
      %346 = arith.mulf %330, %330 : vector<1x128xf32>
      %347 = arith.mulf %333, %333 : vector<1x128xf32>
      %348 = arith.addf %346, %347 : vector<1x128xf32>
      %349 = vector.broadcast %1 : f32 to vector<1x128xf32>
      %350 = arith.cmpf olt, %348, %349 : vector<1x128xf32>
      %cst_168 = arith.constant 0.000000e+00 : f32
      %351 = vector.shape_cast %350 : vector<1x128xi1> to vector<1x128xi1>
      %352 = vector.broadcast %351 : vector<1x128xi1> to vector<25x128xi1>
      %353 = vector.broadcast %cst_168 : f32 to vector<25x128xf32>
      %354 = arith.select %352, %353, %345 : vector<25x128xi1>, vector<25x128xf32>
      %cst_169 = arith.constant 1.000000e+01 : f32
      %355 = vector.broadcast %cst_169 : f32 to vector<25x128xf32>
      %356 = arith.mulf %354, %355 : vector<25x128xf32>
      %357 = math.exp %356 : vector<25x128xf32>
      %cst_170 = arith.constant dense<0.000000e+00> : vector<128xf32>
      %358 = vector.multi_reduction <add>, %357, %cst_170 [0] : vector<25x128xf32> to vector<128xf32>
      %359 = vector.shape_cast %358 : vector<128xf32> to vector<1x128xf32>
      %360 = tpu.reciprocal %359 {approx = true} : vector<1x128xf32> -> vector<1x128xf32>
      %361 = vector.broadcast %360 : vector<1x128xf32> to vector<25x128xf32>
      %362 = arith.mulf %357, %361 : vector<25x128xf32>
      %c0_171 = arith.constant 0 : index
      %c0_172 = arith.constant 0 : index
      %363 = vector.load %arg7[%c0_171, %c0_172] : memref<25x128xf32, #tpu.memory_space<vmem>>, vector<25x128xf32>
      %cst_173 = arith.constant 1.000000e+01 : f32
      %364 = vector.broadcast %cst_173 : f32 to vector<25x128xf32>
      %365 = arith.mulf %363, %364 : vector<25x128xf32>
      %cst_174 = arith.constant dense<0xFF800000> : vector<128xf32>
      %366 = vector.multi_reduction <maximumf>, %365, %cst_174 [0] : vector<25x128xf32> to vector<128xf32>
      %367 = vector.shape_cast %366 : vector<128xf32> to vector<1x128xf32>
      %368 = vector.broadcast %367 : vector<1x128xf32> to vector<25x128xf32>
      %369 = arith.subf %365, %368 : vector<25x128xf32>
      %370 = math.exp %369 : vector<25x128xf32>
      %cst_175 = arith.constant dense<0.000000e+00> : vector<128xf32>
      %371 = vector.multi_reduction <add>, %370, %cst_175 [0] : vector<25x128xf32> to vector<128xf32>
      %372 = vector.shape_cast %371 : vector<128xf32> to vector<1x128xf32>
      %373 = math.log %372 : vector<1x128xf32>
      %374 = vector.broadcast %373 : vector<1x128xf32> to vector<25x128xf32>
      %375 = arith.subf %369, %374 : vector<25x128xf32>
      %376 = arith.mulf %362, %375 : vector<25x128xf32>
      %cst_176 = arith.constant dense<0.000000e+00> : vector<128xf32>
      %377 = vector.multi_reduction <add>, %376, %cst_176 [0] : vector<25x128xf32> to vector<128xf32>
      %378 = vector.shape_cast %377 : vector<128xf32> to vector<1x128xf32>
      %cst_177 = arith.constant 0.000000e+00 : f32
      %379 = vector.broadcast %cst_177 : f32 to vector<1x128xf32>
      %380 = arith.subf %379, %378 : vector<1x128xf32>
      %cst_178 = arith.constant dense<0.000000e+00> : vector<128xf32>
      %381 = vector.multi_reduction <add>, %354, %cst_178 [0] : vector<25x128xf32> to vector<128xf32>
      %382 = vector.shape_cast %381 : vector<128xf32> to vector<1x128xf32>
      %cst_179 = arith.constant 4.000000e-02 : f32
      %383 = vector.broadcast %cst_179 : f32 to vector<1x128xf32>
      %384 = arith.mulf %382, %383 : vector<1x128xf32>
      %cst_180 = arith.constant 0.00999999977 : f32
      %385 = vector.broadcast %cst_180 : f32 to vector<1x128xf32>
      %386 = arith.subf %384, %385 : vector<1x128xf32>
      %cst_181 = arith.constant 0.000000e+00 : f32
      %387 = vector.broadcast %cst_181 : f32 to vector<1x128xf32>
      %388 = arith.maximumf %386, %387 : vector<1x128xf32>
      %389 = tpu.concatenate %380, %388 in 0 : vector<1x128xf32>, vector<1x128xf32> -> vector<2x128xf32>
      %c0_182 = arith.constant 0 : index
      %c0_183 = arith.constant 0 : index
      %390 = vector.load %arg6[%c0_182, %c0_183] : memref<2x128xf32, #tpu.memory_space<vmem>>, vector<2x128xf32>
      tpu.vector_store %arg6[%c0_182, %c0_183], %389 {strides = array<i32>} : memref<2x128xf32, #tpu.memory_space<vmem>>, vector<2x128xf32>,
    } else {
    }
    return
  }
  func.func @transform_0(%arg0: i32, %arg1: i32, %arg2: memref<2xf32, #tpu.memory_space<smem>>) -> (i32, i32) {
    %c0_i32 = arith.constant 0 : i32
    %c0_i32_0 = arith.constant 0 : i32
    return %c0_i32, %arg0 : i32, i32
  }
  func.func @transform_1(%arg0: i32, %arg1: i32, %arg2: memref<2xf32, #tpu.memory_space<smem>>) -> (i32, i32, i32) {
    %c0_i32 = arith.constant 0 : i32
    %c0_i32_0 = arith.constant 0 : i32
    return %c0_i32, %arg1, %arg0 : i32, i32, i32
  }
  func.func @transform_2(%arg0: i32, %arg1: i32, %arg2: memref<2xf32, #tpu.memory_space<smem>>) -> (i32, i32, i32) {
    %c0_i32 = arith.constant 0 : i32
    %c0_i32_0 = arith.constant 0 : i32
    %c0_i32_1 = arith.constant 0 : i32
    return %c0_i32, %c0_i32_0, %arg0 : i32, i32, i32
  }
  func.func @transform_3(%arg0: i32, %arg1: i32, %arg2: memref<2xf32, #tpu.memory_space<smem>>) -> (i32, i32) {
    %c0_i32 = arith.constant 0 : i32
    %c0_i32_0 = arith.constant 0 : i32
    return %c0_i32, %arg0 : i32, i32
  }
}

</mosaic_0001>

<llo_original>
// kernel: tpu_custom_call.1
$region0: #{tpu_custom_call.1}
  #allocation0 [shape = 'u32[]', space=smem, size = 0x4, offset = 0x4, fixed_abs, tag = 'smem constant byte address 0x4 - core index']
  #allocation1 [shape = 'u32[144,128]{1,0:T(1,128)}', space=vmem, size = 0x12000, scoped, tag = 'internal scratch']
  #allocation2 [shape = 'f32[25,128]{1,0:T(8,128)}', space=vmem, size = 0x4000, scoped, tag = 'scratch operand']
  #allocation3 [shape = 's32[1]{0}', space=sflag, size = 0x4, scoped, tag = 'scoped memory for tpu_custom_call.1']
  #allocation4 [shape = 'u8[512]{0}', space=smem, size = 0x200, scoped, tag = 'prefetched SMEM operand 0']
  %s0 = inlined_call_operand.vmem [shape: f32[2], index: 0, kind: input, shape index: {}]
  %s1 = inlined_call_operand.vmem [shape: f32[25,128], index: 1, kind: input, shape index: {}]
  %s2 = inlined_call_operand.hbm [shape: f32[25,32,128], index: 2, kind: input, shape index: {}]
  %s3 = inlined_call_operand.vmem [shape: f32[2,25,128], index: 3, kind: input, shape index: {}]
  %s4 = inlined_call_operand.hbm [shape: f32[2,128], index: 4, kind: output, shape index: {}]
  %s5 = sld [smem:[#allocation0]]
  $region34: #{tpu_custom_call.1} parent=0
    _
  %s7 = ssub.s32 1, %s5
  %s8 = scalar_select 0, %s7, %s5
  %s9 = sshll.u32 %s0, 4
  %s10 = int_to_ptr.vmem [resolvable:$true] %s9
  %12 = dma.vmem_to_smem %s10, 16, [#allocation4], [#allocation3]
  %13 = dma.done [#allocation3], 16
  %14 = sfence
  $region1: #{tpu_custom_call.1} parent=0
    #allocation5 [shape = 'u8[409600]{0}', space=vmem, size = 0x64000, scoped, tag = 'input window, operand 2, single buffered']
    #allocation6 [shape = 's32[1]{0}', space=sflag, size = 0x4, scoped, tag = 'scoped memory for tpu_custom_call.1']
    #allocation7 [shape = 's32[1]{0}', space=sflag, size = 0x4, scoped, tag = 'scoped memory for tpu_custom_call.1']
    #allocation8 [shape = 'u8[1024]{0}', space=vmem, size = 0x400, scoped, tag = 'output window, operand 0, single buffered']
    %15 = vsyncpa [#allocation6], 0
    %16 = vsyncpa [#allocation7], 0
    // Predicated region
    $region2: #{tpu_custom_call.1} parent=1 // pred_check
      _
    $region3: #{tpu_custom_call.1} parent=1 // pred_check_branch
      %18 = sbr.rel (0) target = $region5
    $region4: #{tpu_custom_call.1} parent=1 // pred_region
      _
    $region5: #{tpu_custom_call.1} parent=1 // pred_fallthru
      _
    // Predicated region
    $region6: #{tpu_custom_call.1} parent=1 // pred_check
      _
    $region7: #{tpu_custom_call.1} parent=1 // pred_check_branch
      %20 = sbr.rel (0) target = $region9
    $region8: #{tpu_custom_call.1} parent=1 // pred_region
      %s22 = ssub.s32 12800, 12800
      %23 = vsyncadd [#allocation6], %s22
      %s24 = sshll.u32 [#allocation5], 4
      %s25 = int_to_ptr.vmem [resolvable:$true] %s24
      %30 = dma.hbm_to_vmem [thread:$0]  %s2, 12800, %s25, [#allocation6], 128, 128, 8
    $region9: #{tpu_custom_call.1} parent=1 // pred_fallthru
      _
    // Predicated region
    $region10: #{tpu_custom_call.1} parent=1 // pred_check
      _
    $region11: #{tpu_custom_call.1} parent=1 // pred_check_branch
      %32 = sbr.rel (0) target = $region13
    $region12: #{tpu_custom_call.1} parent=1 // pred_region
      _
    $region13: #{tpu_custom_call.1} parent=1 // pred_fallthru
      _
    // Predicated region
    $region14: #{tpu_custom_call.1} parent=1 // pred_check
      _
    $region15: #{tpu_custom_call.1} parent=1 // pred_check_branch
      %34 = sbr.rel (0) target = $region17
    $region16: #{tpu_custom_call.1} parent=1 // pred_region
      %35 = dma.done [#allocation6], 12800
    $region17: #{tpu_custom_call.1} parent=1 // pred_fallthru
      _
    %s36 = sld [smem:[#allocation4]]
    %s37 = sld [smem:[#allocation4 + $0x1]]
    %v38 = vld [vmem:[%s1] sm:$0xff]
    %v39 = vld [vmem:[%s1 + $0x8] sm:$0xff]
    %v40 = vld [vmem:[%s1 + $0x10] sm:$0xff]
    %v41 = vld [vmem:[%s1 + $0x18] sm:$0x1]
    %v42 = vlaneseq
    %v43 = vshrl.u32 %v42, 7
    %v44 = vadd.s32 %v43, 8
    %v45 = vadd.s32 %v43, 16
    %v46 = vadd.s32 %v43, 24
    %vm47 = vcmask 1040384
    %v48 = vsel %vm47, %v41, -inf
    %v49 = vmax.f32 %v38, %v39
    %v50 = vmax.f32 %v40, %v48
    %v51 = vmax.f32 %v49, %v50
    %v52 = vrot.slane %v51, 4
    %v53 = vmax.f32 %v51, %v52
    %v54 = vrot.slane %v53, 2
    %v55 = vmax.f32 %v53, %v54
    %v56 = vrot.slane %v55, 1
    %v57 = vmax.f32 %v55, %v56
    %vm58 = vcmp.ge.f32.partialorder %v38, %v57
    %vm59 = vcmp.ge.f32.partialorder %v39, %v57
    %vm60 = vcmp.ge.f32.partialorder %v40, %v57
    %vm61 = vcmp.ge.f32.partialorder %v41, %v57
    %v62 = vsel %vm58, %v43, 25
    %v63 = vsel %vm59, %v44, 25
    %v64 = vsel %vm60, %v45, 25
    %v65 = vsel %vm61, %v46, 25
    %v66 = vsel %vm47, %v65, 2147483647
    %vm67 = vcmp.lt.s32.totalorder %v62, %v63
    %v68 = vsel %vm67, %v62, %v63
    %vm69 = vcmp.lt.s32.totalorder %v64, %v66
    %v70 = vsel %vm69, %v64, %v66
    %vm71 = vcmp.lt.s32.totalorder %v68, %v70
    %v72 = vsel %vm71, %v68, %v70
    %v73 = vrot.slane %v72, 4
    %vm74 = vcmp.lt.s32.totalorder %v72, %v73
    %v75 = vsel %vm74, %v72, %v73
    %v76 = vrot.slane %v75, 2
    %vm77 = vcmp.lt.s32.totalorder %v75, %v76
    %v78 = vsel %vm77, %v75, %v76
    %v79 = vrot.slane %v78, 1
    %vm80 = vcmp.lt.s32.totalorder %v78, %v79
    %v81 = vsel %vm80, %v78, %v79
    %v82 = vld [vmem:[#allocation5] sm:$0xff]
    %v83 = vld [vmem:[#allocation5 + $0x8] sm:$0xff]
    %v84 = vld [vmem:[#allocation5 + $0x10] sm:$0xff]
    %v85 = vld [vmem:[#allocation5 + $0x18] sm:$0xff]
    %vm86 = vcmp.eq.s32.totalorder %v81, 1
    %s87 = scalar_lea.vmem [#allocation5], 32
    %v88 = vld [vmem:[%s87] sm:$0xff]
    %v89 = vld [vmem:[%s87 + $0x8] sm:$0xff]
    %v90 = vld [vmem:[%s87 + $0x10] sm:$0xff]
    %v91 = vld [vmem:[%s87 + $0x18] sm:$0xff]
    %v92 = vsel %vm86, 1, 0
    %vm93 = vcmp.eq.s32.totalorder %v92, 1
    %v94 = vsel %vm93, %v88, %v82
    %v95 = vsel %vm93, %v89, %v83
    %v96 = vsel %vm93, %v90, %v84
    %v97 = vsel %vm93, %v91, %v85
    %vm98 = vcmp.eq.s32.totalorder %v81, 2
    %s99 = scalar_lea.vmem [#allocation5], 64
    %v100 = vld [vmem:[%s99] sm:$0xff]
    %v101 = vld [vmem:[%s99 + $0x8] sm:$0xff]
    %v102 = vld [vmem:[%s99 + $0x10] sm:$0xff]
    %v103 = vld [vmem:[%s99 + $0x18] sm:$0xff]
    %v104 = vsel %vm98, 1, 0
    %vm105 = vcmp.eq.s32.totalorder %v104, 1
    %v106 = vsel %vm105, %v100, %v94
    %v107 = vsel %vm105, %v101, %v95
    %v108 = vsel %vm105, %v102, %v96
    %v109 = vsel %vm105, %v103, %v97
    %vm110 = vcmp.eq.s32.totalorder %v81, 3
    %s111 = scalar_lea.vmem [#allocation5], 96
    %v112 = vld [vmem:[%s111] sm:$0xff]
    %v113 = vld [vmem:[%s111 + $0x8] sm:$0xff]
    %v114 = vld [vmem:[%s111 + $0x10] sm:$0xff]
    %v115 = vld [vmem:[%s111 + $0x18] sm:$0xff]
    %v116 = vsel %vm110, 1, 0
    %vm117 = vcmp.eq.s32.totalorder %v116, 1
    %v118 = vsel %vm117, %v112, %v106
    %v119 = vsel %vm117, %v113, %v107
    %v120 = vsel %vm117, %v114, %v108
    %v121 = vsel %vm117, %v115, %v109
    %vm122 = vcmp.eq.s32.totalorder %v81, 4
    %s123 = scalar_lea.vmem [#allocation5], 128
    %v124 = vld [vmem:[%s123] sm:$0xff]
    %v125 = vld [vmem:[%s123 + $0x8] sm:$0xff]
    %v126 = vld [vmem:[%s123 + $0x10] sm:$0xff]
    %v127 = vld [vmem:[%s123 + $0x18] sm:$0xff]
    %v128 = vsel %vm122, 1, 0
    %vm129 = vcmp.eq.s32.totalorder %v128, 1
    %v130 = vsel %vm129, %v124, %v118
    %v131 = vsel %vm129, %v125, %v119
    %v132 = vsel %vm129, %v126, %v120
    %v133 = vsel %vm129, %v127, %v121
    %vm134 = vcmp.eq.s32.totalorder %v81, 5
    %s135 = scalar_lea.vmem [#allocation5], 160
    %v136 = vld [vmem:[%s135] sm:$0xff]
    %v137 = vld [vmem:[%s135 + $0x8] sm:$0xff]
    %v138 = vld [vmem:[%s135 + $0x10] sm:$0xff]
    %v139 = vld [vmem:[%s135 + $0x18] sm:$0xff]
    %v140 = vsel %vm134, 1, 0
    %vm141 = vcmp.eq.s32.totalorder %v140, 1
    %v142 = vsel %vm141, %v136, %v130
    %v143 = vsel %vm141, %v137, %v131
    %v144 = vsel %vm141, %v138, %v132
    %v145 = vsel %vm141, %v139, %v133
    %vm146 = vcmp.eq.s32.totalorder %v81, 6
    %s147 = scalar_lea.vmem [#allocation5], 192
    %v148 = vld [vmem:[%s147] sm:$0xff]
    %v149 = vld [vmem:[%s147 + $0x8] sm:$0xff]
    %v150 = vld [vmem:[%s147 + $0x10] sm:$0xff]
    %v151 = vld [vmem:[%s147 + $0x18] sm:$0xff]
    %v152 = vsel %vm146, 1, 0
    %vm153 = vcmp.eq.s32.totalorder %v152, 1
    %v154 = vsel %vm153, %v148, %v142
    %v155 = vsel %vm153, %v149, %v143
    %v156 = vsel %vm153, %v150, %v144
    %v157 = vsel %vm153, %v151, %v145
    %vm158 = vcmp.eq.s32.totalorder %v81, 7
    %s159 = scalar_lea.vmem [#allocation5], 224
    %v160 = vld [vmem:[%s159] sm:$0xff]
    %v161 = vld [vmem:[%s159 + $0x8] sm:$0xff]
    %v162 = vld [vmem:[%s159 + $0x10] sm:$0xff]
    %v163 = vld [vmem:[%s159 + $0x18] sm:$0xff]
    %v164 = vsel %vm158, 1, 0
    %vm165 = vcmp.eq.s32.totalorder %v164, 1
    %v166 = vsel %vm165, %v160, %v154
    %v167 = vsel %vm165, %v161, %v155
    %v168 = vsel %vm165, %v162, %v156
    %v169 = vsel %vm165, %v163, %v157
    %vm170 = vcmp.eq.s32.totalorder %v81, 8
    %s171 = scalar_lea.vmem [#allocation5], 256
    %v172 = vld [vmem:[%s171] sm:$0xff]
    %v173 = vld [vmem:[%s171 + $0x8] sm:$0xff]
    %v174 = vld [vmem:[%s171 + $0x10] sm:$0xff]
    %v175 = vld [vmem:[%s171 + $0x18] sm:$0xff]
    %v176 = vsel %vm170, 1, 0
    %vm177 = vcmp.eq.s32.totalorder %v176, 1
    %v178 = vsel %vm177, %v172, %v166
    %v179 = vsel %vm177, %v173, %v167
    %v180 = vsel %vm177, %v174, %v168
    %v181 = vsel %vm177, %v175, %v169
    %vm182 = vcmp.eq.s32.totalorder %v81, 9
    %s183 = scalar_lea.vmem [#allocation5], 288
    %v184 = vld [vmem:[%s183] sm:$0xff]
    %v185 = vld [vmem:[%s183 + $0x8] sm:$0xff]
    %v186 = vld [vmem:[%s183 + $0x10] sm:$0xff]
    %v187 = vld [vmem:[%s183 + $0x18] sm:$0xff]
    %v188 = vsel %vm182, 1, 0
    %vm189 = vcmp.eq.s32.totalorder %v188, 1
    %v190 = vsel %vm189, %v184, %v178
    %v191 = vsel %vm189, %v185, %v179
    %v192 = vsel %vm189, %v186, %v180
    %v193 = vsel %vm189, %v187, %v181
    %vm194 = vcmp.eq.s32.totalorder %v81, 10
    %s195 = scalar_lea.vmem [#allocation5], 320
    %v196 = vld [vmem:[%s195] sm:$0xff]
    %v197 = vld [vmem:[%s195 + $0x8] sm:$0xff]
    %v198 = vld [vmem:[%s195 + $0x10] sm:$0xff]
    %v199 = vld [vmem:[%s195 + $0x18] sm:$0xff]
    %v200 = vsel %vm194, 1, 0
    %vm201 = vcmp.eq.s32.totalorder %v200, 1
    %v202 = vsel %vm201, %v196, %v190
    %v203 = vsel %vm201, %v197, %v191
    %v204 = vsel %vm201, %v198, %v192
    %v205 = vsel %vm201, %v199, %v193
    %vm206 = vcmp.eq.s32.totalorder %v81, 11
    %s207 = scalar_lea.vmem [#allocation5], 352
    %v208 = vld [vmem:[%s207] sm:$0xff]
    %v209 = vld [vmem:[%s207 + $0x8] sm:$0xff]
    %v210 = vld [vmem:[%s207 + $0x10] sm:$0xff]
    %v211 = vld [vmem:[%s207 + $0x18] sm:$0xff]
    %v212 = vsel %vm206, 1, 0
    %vm213 = vcmp.eq.s32.totalorder %v212, 1
    %v214 = vsel %vm213, %v208, %v202
    %v215 = vsel %vm213, %v209, %v203
    %v216 = vsel %vm213, %v210, %v204
    %v217 = vsel %vm213, %v211, %v205
    %vm218 = vcmp.eq.s32.totalorder %v81, 12
    %s219 = scalar_lea.vmem [#allocation5], 384
    %v220 = vld [vmem:[%s219] sm:$0xff]
    %v221 = vld [vmem:[%s219 + $0x8] sm:$0xff]
    %v222 = vld [vmem:[%s219 + $0x10] sm:$0xff]
    %v223 = vld [vmem:[%s219 + $0x18] sm:$0xff]
    %v224 = vsel %vm218, 1, 0
    %vm225 = vcmp.eq.s32.totalorder %v224, 1
    %v226 = vsel %vm225, %v220, %v214
    %v227 = vsel %vm225, %v221, %v215
    %v228 = vsel %vm225, %v222, %v216
    %v229 = vsel %vm225, %v223, %v217
    %vm230 = vcmp.eq.s32.totalorder %v81, 13
    %s231 = scalar_lea.vmem [#allocation5], 416
    %v232 = vld [vmem:[%s231] sm:$0xff]
    %v233 = vld [vmem:[%s231 + $0x8] sm:$0xff]
    %v234 = vld [vmem:[%s231 + $0x10] sm:$0xff]
    %v235 = vld [vmem:[%s231 + $0x18] sm:$0xff]
    %v236 = vsel %vm230, 1, 0
    %vm237 = vcmp.eq.s32.totalorder %v236, 1
    %v238 = vsel %vm237, %v232, %v226
    %v239 = vsel %vm237, %v233, %v227
    %v240 = vsel %vm237, %v234, %v228
    %v241 = vsel %vm237, %v235, %v229
    %vm242 = vcmp.eq.s32.totalorder %v81, 14
    %s243 = scalar_lea.vmem [#allocation5], 448
    %v244 = vld [vmem:[%s243] sm:$0xff]
    %v245 = vld [vmem:[%s243 + $0x8] sm:$0xff]
    %v246 = vld [vmem:[%s243 + $0x10] sm:$0xff]
    %v247 = vld [vmem:[%s243 + $0x18] sm:$0xff]
    %v248 = vsel %vm242, 1, 0
    %vm249 = vcmp.eq.s32.totalorder %v248, 1
    %v250 = vsel %vm249, %v244, %v238
    %v251 = vsel %vm249, %v245, %v239
    %v252 = vsel %vm249, %v246, %v240
    %v253 = vsel %vm249, %v247, %v241
    %vm254 = vcmp.eq.s32.totalorder %v81, 15
    %s255 = scalar_lea.vmem [#allocation5], 480
    %v256 = vld [vmem:[%s255] sm:$0xff]
    %v257 = vld [vmem:[%s255 + $0x8] sm:$0xff]
    %v258 = vld [vmem:[%s255 + $0x10] sm:$0xff]
    %v259 = vld [vmem:[%s255 + $0x18] sm:$0xff]
    %v260 = vsel %vm254, 1, 0
    %vm261 = vcmp.eq.s32.totalorder %v260, 1
    %v262 = vsel %vm261, %v256, %v250
    %v263 = vsel %vm261, %v257, %v251
    %v264 = vsel %vm261, %v258, %v252
    %v265 = vsel %vm261, %v259, %v253
    %vm266 = vcmp.eq.s32.totalorder %v81, 16
    %s267 = scalar_lea.vmem [#allocation5], 512
    %v268 = vld [vmem:[%s267] sm:$0xff]
    %v269 = vld [vmem:[%s267 + $0x8] sm:$0xff]
    %v270 = vld [vmem:[%s267 + $0x10] sm:$0xff]
    %v271 = vld [vmem:[%s267 + $0x18] sm:$0xff]
    %v272 = vsel %vm266, 1, 0
    %vm273 = vcmp.eq.s32.totalorder %v272, 1
    %v274 = vsel %vm273, %v268, %v262
    %v275 = vsel %vm273, %v269, %v263
    %v276 = vsel %vm273, %v270, %v264
    %v277 = vsel %vm273, %v271, %v265
    %vm278 = vcmp.eq.s32.totalorder %v81, 17
    %s279 = scalar_lea.vmem [#allocation5], 544
    %v280 = vld [vmem:[%s279] sm:$0xff]
    %v281 = vld [vmem:[%s279 + $0x8] sm:$0xff]
    %v282 = vld [vmem:[%s279 + $0x10] sm:$0xff]
    %v283 = vld [vmem:[%s279 + $0x18] sm:$0xff]
    %v284 = vsel %vm278, 1, 0
    %vm285 = vcmp.eq.s32.totalorder %v284, 1
    %v286 = vsel %vm285, %v280, %v274
    %v287 = vsel %vm285, %v281, %v275
    %v288 = vsel %vm285, %v282, %v276
    %v289 = vsel %vm285, %v283, %v277
    %vm290 = vcmp.eq.s32.totalorder %v81, 18
    %s291 = scalar_lea.vmem [#allocation5], 576
    %v292 = vld [vmem:[%s291] sm:$0xff]
    %v293 = vld [vmem:[%s291 + $0x8] sm:$0xff]
    %v294 = vld [vmem:[%s291 + $0x10] sm:$0xff]
    %v295 = vld [vmem:[%s291 + $0x18] sm:$0xff]
    %v296 = vsel %vm290, 1, 0
    %vm297 = vcmp.eq.s32.totalorder %v296, 1
    %v298 = vsel %vm297, %v292, %v286
    %v299 = vsel %vm297, %v293, %v287
    %v300 = vsel %vm297, %v294, %v288
    %v301 = vsel %vm297, %v295, %v289
    %vm302 = vcmp.eq.s32.totalorder %v81, 19
    %s303 = scalar_lea.vmem [#allocation5], 608
    %v304 = vld [vmem:[%s303] sm:$0xff]
    %v305 = vld [vmem:[%s303 + $0x8] sm:$0xff]
    %v306 = vld [vmem:[%s303 + $0x10] sm:$0xff]
    %v307 = vld [vmem:[%s303 + $0x18] sm:$0xff]
    %v308 = vsel %vm302, 1, 0
    %vm309 = vcmp.eq.s32.totalorder %v308, 1
    %v310 = vsel %vm309, %v304, %v298
    %v311 = vsel %vm309, %v305, %v299
    %v312 = vsel %vm309, %v306, %v300
    %v313 = vsel %vm309, %v307, %v301
    %vm314 = vcmp.eq.s32.totalorder %v81, 20
    %s315 = scalar_lea.vmem [#allocation5], 640
    %v316 = vld [vmem:[%s315] sm:$0xff]
    %v317 = vld [vmem:[%s315 + $0x8] sm:$0xff]
    %v318 = vld [vmem:[%s315 + $0x10] sm:$0xff]
    %v319 = vld [vmem:[%s315 + $0x18] sm:$0xff]
    %v320 = vsel %vm314, 1, 0
    %vm321 = vcmp.eq.s32.totalorder %v320, 1
    %v322 = vsel %vm321, %v316, %v310
    %v323 = vsel %vm321, %v317, %v311
    %v324 = vsel %vm321, %v318, %v312
    %v325 = vsel %vm321, %v319, %v313
    %vm326 = vcmp.eq.s32.totalorder %v81, 21
    %s327 = scalar_lea.vmem [#allocation5], 672
    %v328 = vld [vmem:[%s327] sm:$0xff]
    %v329 = vld [vmem:[%s327 + $0x8] sm:$0xff]
    %v330 = vld [vmem:[%s327 + $0x10] sm:$0xff]
    %v331 = vld [vmem:[%s327 + $0x18] sm:$0xff]
    %v332 = vsel %vm326, 1, 0
    %vm333 = vcmp.eq.s32.totalorder %v332, 1
    %v334 = vsel %vm333, %v328, %v322
    %v335 = vsel %vm333, %v329, %v323
    %v336 = vsel %vm333, %v330, %v324
    %v337 = vsel %vm333, %v331, %v325
    %vm338 = vcmp.eq.s32.totalorder %v81, 22
    %s339 = scalar_lea.vmem [#allocation5], 704
    %v340 = vld [vmem:[%s339] sm:$0xff]
    %v341 = vld [vmem:[%s339 + $0x8] sm:$0xff]
    %v342 = vld [vmem:[%s339 + $0x10] sm:$0xff]
    %v343 = vld [vmem:[%s339 + $0x18] sm:$0xff]
    %v344 = vsel %vm338, 1, 0
    %vm345 = vcmp.eq.s32.totalorder %v344, 1
    %v346 = vsel %vm345, %v340, %v334
    %v347 = vsel %vm345, %v341, %v335
    %v348 = vsel %vm345, %v342, %v336
    %v349 = vsel %vm345, %v343, %v337
    %vm350 = vcmp.eq.s32.totalorder %v81, 23
    %s351 = scalar_lea.vmem [#allocation5], 736
    %v352 = vld [vmem:[%s351] sm:$0xff]
    %v353 = vld [vmem:[%s351 + $0x8] sm:$0xff]
    %v354 = vld [vmem:[%s351 + $0x10] sm:$0xff]
    %v355 = vld [vmem:[%s351 + $0x18] sm:$0xff]
    %v356 = vsel %vm350, 1, 0
    %vm357 = vcmp.eq.s32.totalorder %v356, 1
    %v358 = vsel %vm357, %v352, %v346
    %v359 = vsel %vm357, %v353, %v347
    %v360 = vsel %vm357, %v354, %v348
    %v361 = vsel %vm357, %v355, %v349
    %vm362 = vcmp.eq.s32.totalorder %v81, 24
    %s363 = scalar_lea.vmem [#allocation5], 768
    %v364 = vld [vmem:[%s363] sm:$0xff]
    %v365 = vld [vmem:[%s363 + $0x8] sm:$0xff]
    %v366 = vld [vmem:[%s363 + $0x10] sm:$0xff]
    %v367 = vld [vmem:[%s363 + $0x18] sm:$0xff]
    %v368 = vsel %vm362, 1, 0
    %vm369 = vcmp.eq.s32.totalorder %v368, 1
    %v370 = vsel %vm369, %v364, %v358
    %v371 = vsel %vm369, %v365, %v359
    %v372 = vsel %vm369, %v366, %v360
    %v373 = vsel %vm369, %v367, %v361
    %v374 = vmul.f32 %v82, %v370
    %v375 = vmul.f32 %v83, %v371
    %v376 = vmul.f32 %v84, %v372
    %v377 = vmul.f32 %v85, %v373
    %v378 = vadd.f32 %v374, %v375
    %v379 = vadd.f32 %v378, %v376
    %v380 = vadd.f32 %v379, %v377
    %v381 = vrot.slane %v380, 4
    %v382 = vadd.f32 %v380, %v381
    %v383 = vrot.slane %v382, 2
    %v384 = vadd.f32 %v382, %v383
    %v385 = vrot.slane %v384, 1
    %v386 = vadd.f32 %v384, %v385
    %v387 = vmul.f32 %v88, %v370
    %v388 = vmul.f32 %v89, %v371
    %v389 = vmul.f32 %v90, %v372
    %v390 = vmul.f32 %v91, %v373
    %v391 = vadd.f32 %v387, %v388
    %v392 = vadd.f32 %v391, %v389
    %v393 = vadd.f32 %v392, %v390
    %v394 = vrot.slane %v393, 4
    %v395 = vadd.f32 %v393, %v394
    %v396 = vrot.slane %v395, 2
    %v397 = vadd.f32 %v395, %v396
    %v398 = vrot.slane %v397, 1
    %v399 = vadd.f32 %v397, %v398
    %v400 = vmul.f32 %v100, %v370
    %v401 = vmul.f32 %v101, %v371
    %v402 = vmul.f32 %v102, %v372
    %v403 = vmul.f32 %v103, %v373
    %v404 = vadd.f32 %v400, %v401
    %v405 = vadd.f32 %v404, %v402
    %v406 = vadd.f32 %v405, %v403
    %v407 = vrot.slane %v406, 4
    %v408 = vadd.f32 %v406, %v407
    %v409 = vrot.slane %v408, 2
    %v410 = vadd.f32 %v408, %v409
    %v411 = vrot.slane %v410, 1
    %v412 = vadd.f32 %v410, %v411
    %v413 = vmul.f32 %v112, %v370
    %v414 = vmul.f32 %v113, %v371
    %v415 = vmul.f32 %v114, %v372
    %v416 = vmul.f32 %v115, %v373
    %v417 = vadd.f32 %v413, %v414
    %v418 = vadd.f32 %v417, %v415
    %v419 = vadd.f32 %v418, %v416
    %v420 = vrot.slane %v419, 4
    %v421 = vadd.f32 %v419, %v420
    %v422 = vrot.slane %v421, 2
    %v423 = vadd.f32 %v421, %v422
    %v424 = vrot.slane %v423, 1
    %v425 = vadd.f32 %v423, %v424
    %v426 = vmul.f32 %v124, %v370
    %v427 = vmul.f32 %v125, %v371
    %v428 = vmul.f32 %v126, %v372
    %v429 = vmul.f32 %v127, %v373
    %v430 = vadd.f32 %v426, %v427
    %v431 = vadd.f32 %v430, %v428
    %v432 = vadd.f32 %v431, %v429
    %v433 = vrot.slane %v432, 4
    %v434 = vadd.f32 %v432, %v433
    %v435 = vrot.slane %v434, 2
    %v436 = vadd.f32 %v434, %v435
    %v437 = vrot.slane %v436, 1
    %v438 = vadd.f32 %v436, %v437
    %v439 = vmul.f32 %v136, %v370
    %v440 = vmul.f32 %v137, %v371
    %v441 = vmul.f32 %v138, %v372
    %v442 = vmul.f32 %v139, %v373
    %v443 = vadd.f32 %v439, %v440
    %v444 = vadd.f32 %v443, %v441
    %v445 = vadd.f32 %v444, %v442
    %v446 = vrot.slane %v445, 4
    %v447 = vadd.f32 %v445, %v446
    %v448 = vrot.slane %v447, 2
    %v449 = vadd.f32 %v447, %v448
    %v450 = vrot.slane %v449, 1
    %v451 = vadd.f32 %v449, %v450
    %v452 = vmul.f32 %v148, %v370
    %v453 = vmul.f32 %v149, %v371
    %v454 = vmul.f32 %v150, %v372
    %v455 = vmul.f32 %v151, %v373
    %v456 = vadd.f32 %v452, %v453
    %v457 = vadd.f32 %v456, %v454
    %v458 = vadd.f32 %v457, %v455
    %v459 = vrot.slane %v458, 4
    %v460 = vadd.f32 %v458, %v459
    %v461 = vrot.slane %v460, 2
    %v462 = vadd.f32 %v460, %v461
    %v463 = vrot.slane %v462, 1
    %v464 = vadd.f32 %v462, %v463
    %v465 = vmul.f32 %v160, %v370
    %v466 = vmul.f32 %v161, %v371
    %v467 = vmul.f32 %v162, %v372
    %v468 = vmul.f32 %v163, %v373
    %v469 = vadd.f32 %v465, %v466
    %v470 = vadd.f32 %v469, %v467
    %v471 = vadd.f32 %v470, %v468
    %v472 = vrot.slane %v471, 4
    %v473 = vadd.f32 %v471, %v472
    %v474 = vrot.slane %v473, 2
    %v475 = vadd.f32 %v473, %v474
    %v476 = vrot.slane %v475, 1
    %v477 = vadd.f32 %v475, %v476
    %v478 = vmul.f32 %v172, %v370
    %v479 = vmul.f32 %v173, %v371
    %v480 = vmul.f32 %v174, %v372
    %v481 = vmul.f32 %v175, %v373
    %v482 = vadd.f32 %v478, %v479
    %v483 = vadd.f32 %v482, %v480
    %v484 = vadd.f32 %v483, %v481
    %v485 = vrot.slane %v484, 4
    %v486 = vadd.f32 %v484, %v485
    %v487 = vrot.slane %v486, 2
    %v488 = vadd.f32 %v486, %v487
    %v489 = vrot.slane %v488, 1
    %v490 = vadd.f32 %v488, %v489
    %v491 = vmul.f32 %v184, %v370
    %v492 = vmul.f32 %v185, %v371
    %v493 = vmul.f32 %v186, %v372
    %v494 = vmul.f32 %v187, %v373
    %v495 = vadd.f32 %v491, %v492
    %v496 = vadd.f32 %v495, %v493
    %v497 = vadd.f32 %v496, %v494
    %v498 = vrot.slane %v497, 4
    %v499 = vadd.f32 %v497, %v498
    %v500 = vrot.slane %v499, 2
    %v501 = vadd.f32 %v499, %v500
    %v502 = vrot.slane %v501, 1
    %v503 = vadd.f32 %v501, %v502
    %v504 = vmul.f32 %v196, %v370
    %v505 = vmul.f32 %v197, %v371
    %v506 = vmul.f32 %v198, %v372
    %v507 = vmul.f32 %v199, %v373
    %v508 = vadd.f32 %v504, %v505
    %v509 = vadd.f32 %v508, %v506
    %v510 = vadd.f32 %v509, %v507
    %v511 = vrot.slane %v510, 4
    %v512 = vadd.f32 %v510, %v511
    %v513 = vrot.slane %v512, 2
    %v514 = vadd.f32 %v512, %v513
    %v515 = vrot.slane %v514, 1
    %v516 = vadd.f32 %v514, %v515
    %v517 = vmul.f32 %v208, %v370
    %v518 = vmul.f32 %v209, %v371
    %v519 = vmul.f32 %v210, %v372
    %v520 = vmul.f32 %v211, %v373
    %v521 = vadd.f32 %v517, %v518
    %v522 = vadd.f32 %v521, %v519
    %v523 = vadd.f32 %v522, %v520
    %v524 = vrot.slane %v523, 4
    %v525 = vadd.f32 %v523, %v524
    %v526 = vrot.slane %v525, 2
    %v527 = vadd.f32 %v525, %v526
    %v528 = vrot.slane %v527, 1
    %v529 = vadd.f32 %v527, %v528
    %v530 = vmul.f32 %v220, %v370
    %v531 = vmul.f32 %v221, %v371
    %v532 = vmul.f32 %v222, %v372
    %v533 = vmul.f32 %v223, %v373
    %v534 = vadd.f32 %v530, %v531
    %v535 = vadd.f32 %v534, %v532
    %v536 = vadd.f32 %v535, %v533
    %v537 = vrot.slane %v536, 4
    %v538 = vadd.f32 %v536, %v537
    %v539 = vrot.slane %v538, 2
    %v540 = vadd.f32 %v538, %v539
    %v541 = vrot.slane %v540, 1
    %v542 = vadd.f32 %v540, %v541
    %v543 = vmul.f32 %v232, %v370
    %v544 = vmul.f32 %v233, %v371
    %v545 = vmul.f32 %v234, %v372
    %v546 = vmul.f32 %v235, %v373
    %v547 = vadd.f32 %v543, %v544
    %v548 = vadd.f32 %v547, %v545
    %v549 = vadd.f32 %v548, %v546
    %v550 = vrot.slane %v549, 4
    %v551 = vadd.f32 %v549, %v550
    %v552 = vrot.slane %v551, 2
    %v553 = vadd.f32 %v551, %v552
    %v554 = vrot.slane %v553, 1
    %v555 = vadd.f32 %v553, %v554
    %v556 = vmul.f32 %v244, %v370
    %v557 = vmul.f32 %v245, %v371
    %v558 = vmul.f32 %v246, %v372
    %v559 = vmul.f32 %v247, %v373
    %v560 = vadd.f32 %v556, %v557
    %v561 = vadd.f32 %v560, %v558
    %v562 = vadd.f32 %v561, %v559
    %v563 = vrot.slane %v562, 4
    %v564 = vadd.f32 %v562, %v563
    %v565 = vrot.slane %v564, 2
    %v566 = vadd.f32 %v564, %v565
    %v567 = vrot.slane %v566, 1
    %v568 = vadd.f32 %v566, %v567
    %v569 = vmul.f32 %v256, %v370
    %v570 = vmul.f32 %v257, %v371
    %v571 = vmul.f32 %v258, %v372
    %v572 = vmul.f32 %v259, %v373
    %v573 = vadd.f32 %v569, %v570
    %v574 = vadd.f32 %v573, %v571
    %v575 = vadd.f32 %v574, %v572
    %v576 = vrot.slane %v575, 4
    %v577 = vadd.f32 %v575, %v576
    %v578 = vrot.slane %v577, 2
    %v579 = vadd.f32 %v577, %v578
    %v580 = vrot.slane %v579, 1
    %v581 = vadd.f32 %v579, %v580
    %v582 = vmul.f32 %v268, %v370
    %v583 = vmul.f32 %v269, %v371
    %v584 = vmul.f32 %v270, %v372
    %v585 = vmul.f32 %v271, %v373
    %v586 = vadd.f32 %v582, %v583
    %v587 = vadd.f32 %v586, %v584
    %v588 = vadd.f32 %v587, %v585
    %v589 = vrot.slane %v588, 4
    %v590 = vadd.f32 %v588, %v589
    %v591 = vrot.slane %v590, 2
    %v592 = vadd.f32 %v590, %v591
    %v593 = vrot.slane %v592, 1
    %v594 = vadd.f32 %v592, %v593
    %v595 = vmul.f32 %v280, %v370
    %v596 = vmul.f32 %v281, %v371
    %v597 = vmul.f32 %v282, %v372
    %v598 = vmul.f32 %v283, %v373
    %v599 = vadd.f32 %v595, %v596
    %v600 = vadd.f32 %v599, %v597
    %v601 = vadd.f32 %v600, %v598
    %v602 = vrot.slane %v601, 4
    %v603 = vadd.f32 %v601, %v602
    %v604 = vrot.slane %v603, 2
    %v605 = vadd.f32 %v603, %v604
    %v606 = vrot.slane %v605, 1
    %v607 = vadd.f32 %v605, %v606
    %v608 = vmul.f32 %v292, %v370
    %v609 = vmul.f32 %v293, %v371
    %v610 = vmul.f32 %v294, %v372
    %v611 = vmul.f32 %v295, %v373
    %v612 = vadd.f32 %v608, %v609
    %v613 = vadd.f32 %v612, %v610
    %v614 = vadd.f32 %v613, %v611
    %v615 = vrot.slane %v614, 4
    %v616 = vadd.f32 %v614, %v615
    %v617 = vrot.slane %v616, 2
    %v618 = vadd.f32 %v616, %v617
    %v619 = vrot.slane %v618, 1
    %v620 = vadd.f32 %v618, %v619
    %v621 = vmul.f32 %v304, %v370
    %v622 = vmul.f32 %v305, %v371
    %v623 = vmul.f32 %v306, %v372
    %v624 = vmul.f32 %v307, %v373
    %v625 = vadd.f32 %v621, %v622
    %v626 = vadd.f32 %v625, %v623
    %v627 = vadd.f32 %v626, %v624
    %v628 = vrot.slane %v627, 4
    %v629 = vadd.f32 %v627, %v628
    %v630 = vrot.slane %v629, 2
    %v631 = vadd.f32 %v629, %v630
    %v632 = vrot.slane %v631, 1
    %v633 = vadd.f32 %v631, %v632
    %v634 = vmul.f32 %v316, %v370
    %v635 = vmul.f32 %v317, %v371
    %v636 = vmul.f32 %v318, %v372
    %v637 = vmul.f32 %v319, %v373
    %v638 = vadd.f32 %v634, %v635
    %v639 = vadd.f32 %v638, %v636
    %v640 = vadd.f32 %v639, %v637
    %v641 = vrot.slane %v640, 4
    %v642 = vadd.f32 %v640, %v641
    %v643 = vrot.slane %v642, 2
    %v644 = vadd.f32 %v642, %v643
    %v645 = vrot.slane %v644, 1
    %v646 = vadd.f32 %v644, %v645
    %v647 = vmul.f32 %v328, %v370
    %v648 = vmul.f32 %v329, %v371
    %v649 = vmul.f32 %v330, %v372
    %v650 = vmul.f32 %v331, %v373
    %v651 = vadd.f32 %v647, %v648
    %v652 = vadd.f32 %v651, %v649
    %v653 = vadd.f32 %v652, %v650
    %v654 = vrot.slane %v653, 4
    %v655 = vadd.f32 %v653, %v654
    %v656 = vrot.slane %v655, 2
    %v657 = vadd.f32 %v655, %v656
    %v658 = vrot.slane %v657, 1
    %v659 = vadd.f32 %v657, %v658
    %v660 = vmul.f32 %v340, %v370
    %v661 = vmul.f32 %v341, %v371
    %v662 = vmul.f32 %v342, %v372
    %v663 = vmul.f32 %v343, %v373
    %v664 = vadd.f32 %v660, %v661
    %v665 = vadd.f32 %v664, %v662
    %v666 = vadd.f32 %v665, %v663
    %v667 = vrot.slane %v666, 4
    %v668 = vadd.f32 %v666, %v667
    %v669 = vrot.slane %v668, 2
    %v670 = vadd.f32 %v668, %v669
    %v671 = vrot.slane %v670, 1
    %v672 = vadd.f32 %v670, %v671
    %v673 = vmul.f32 %v352, %v370
    %v674 = vmul.f32 %v353, %v371
    %v675 = vmul.f32 %v354, %v372
    %v676 = vmul.f32 %v355, %v373
    %v677 = vadd.f32 %v673, %v674
    %v678 = vadd.f32 %v677, %v675
    %v679 = vadd.f32 %v678, %v676
    %v680 = vrot.slane %v679, 4
    %v681 = vadd.f32 %v679, %v680
    %v682 = vrot.slane %v681, 2
    %v683 = vadd.f32 %v681, %v682
    %v684 = vrot.slane %v683, 1
    %v685 = vadd.f32 %v683, %v684
    %v686 = vmul.f32 %v364, %v370
    %v687 = vmul.f32 %v365, %v371
    %v688 = vmul.f32 %v366, %v372
    %v689 = vmul.f32 %v367, %v373
    %v690 = vadd.f32 %v686, %v687
    %v691 = vadd.f32 %v690, %v688
    %v692 = vadd.f32 %v691, %v689
    %v693 = vrot.slane %v692, 4
    %v694 = vadd.f32 %v692, %v693
    %v695 = vrot.slane %v694, 2
    %v696 = vadd.f32 %v694, %v695
    %v697 = vrot.slane %v696, 1
    %v698 = vadd.f32 %v696, %v697
    %v699 = vsel %vm47, %v386, %v399
    %vm700 = vcmask 1041408
    %v701 = vsel %vm700, %v699, %v412
    %vm702 = vcmask 1042432
    %v703 = vsel %vm702, %v701, %v425
    %vm704 = vcmask 1043456
    %v705 = vsel %vm704, %v703, %v438
    %vm706 = vcmask 1044480
    %v707 = vsel %vm706, %v705, %v451
    %vm708 = vcmask 1045504
    %v709 = vsel %vm708, %v707, %v464
    %vm710 = vcmask 1046528
    %v711 = vsel %vm710, %v709, %v477
    %v712 = vsel %vm47, %v490, %v503
    %v713 = vsel %vm700, %v712, %v516
    %v714 = vsel %vm702, %v713, %v529
    %v715 = vsel %vm704, %v714, %v542
    %v716 = vsel %vm706, %v715, %v555
    %v717 = vsel %vm708, %v716, %v568
    %v718 = vsel %vm710, %v717, %v581
    %v719 = vsel %vm47, %v594, %v607
    %v720 = vsel %vm700, %v719, %v620
    %v721 = vsel %vm702, %v720, %v633
    %v722 = vsel %vm704, %v721, %v646
    %v723 = vsel %vm706, %v722, %v659
    %v724 = vsel %vm708, %v723, %v672
    %v725 = vsel %vm710, %v724, %v685
    %p726 = scmp.eq.s32.totalorder 0, 0
    // Predicated region
    $region18: #{tpu_custom_call.1} parent=1 // pred_check
      %p727 = pneg %p726
    $region19: #{tpu_custom_call.1} parent=1 // pred_check_branch
      %729 = sbr.rel (%p727) target = $region21
    $region20: #{tpu_custom_call.1} parent=1 // pred_region
      %730 = vst [vmem:[#allocation2] sm:$0xff] 0.0
      %731 = vst [vmem:[#allocation2 + $0x8] sm:$0xff] 0.0
      %732 = vst [vmem:[#allocation2 + $0x10] sm:$0xff] 0.0
      %733 = vst [vmem:[#allocation2 + $0x18] sm:$0x1] 0.0
    $region21: #{tpu_custom_call.1} parent=1 // pred_fallthru
      _
    %v734 = vld [vmem:[#allocation2] sm:$0xff]
    %v735 = vld [vmem:[#allocation2 + $0x8] sm:$0xff]
    %v736 = vld [vmem:[#allocation2 + $0x10] sm:$0xff]
    %v737 = vld [vmem:[#allocation2 + $0x18] sm:$0x1]
    %v738 = vadd.f32 %v734, %v711
    %v739 = vadd.f32 %v735, %v718
    %v740 = vadd.f32 %v736, %v725
    %v741 = vadd.f32 %v737, %v698
    %742 = vst [vmem:[#allocation2] sm:$0xff] %v738
    %743 = vst [vmem:[#allocation2 + $0x8] sm:$0xff] %v739
    %744 = vst [vmem:[#allocation2 + $0x10] sm:$0xff] %v740
    %745 = vst [vmem:[#allocation2 + $0x18] sm:$0x1] %v741
    // Predicated region
    $region22: #{tpu_custom_call.1} parent=1 // pred_check
      %p746 = pneg %p726
    $region23: #{tpu_custom_call.1} parent=1 // pred_check_branch
      %748 = sbr.rel (%p746) target = $region25
    $region24: #{tpu_custom_call.1} parent=1 // pred_region
      %v749 = vld [vmem:[%s3] sm:$0xff]
      %v750 = vld [vmem:[%s3 + $0x8] sm:$0xff]
      %v751 = vld [vmem:[%s3 + $0x10] sm:$0xff]
      %v752 = vld [vmem:[%s3 + $0x18] sm:$0x1]
      %v753 = vld [vmem:[%s3 + $0x20] sm:$0xff]
      %v754 = vld [vmem:[%s3 + $0x28] sm:$0xff]
      %v755 = vld [vmem:[%s3 + $0x30] sm:$0xff]
      %v756 = vld [vmem:[%s3 + $0x38] sm:$0x1]
      %vm757 = vcmp.eq.s32.totalorder %v43, %v81
      %vm758 = vcmp.eq.s32.totalorder %v44, %v81
      %vm759 = vcmp.eq.s32.totalorder %v45, %v81
      %vm760 = vcmp.eq.s32.totalorder %v46, %v81
      %v761 = vsel %vm757, 1, 0
      %v762 = vsel %vm758, 1, 0
      %v763 = vsel %vm759, 1, 0
      %v764 = vsel %vm760, 1, 0
      %v765 = vcvt.s32.f32 %v761
      %v766 = vcvt.s32.f32 %v762
      %v767 = vcvt.s32.f32 %v763
      %v768 = vcvt.s32.f32 %v764
      %v769 = vmul.f32 %v749, %v765
      %v770 = vmul.f32 %v750, %v766
      %v771 = vmul.f32 %v751, %v767
      %v772 = vmul.f32 %v752, %v768
      %v773 = vadd.f32 %v769, %v770
      %v774 = vadd.f32 %v773, %v771
      %v775 = vsel %vm47, %v772, 0.0
      %v776 = vadd.f32 %v774, %v775
      %v777 = vrot.slane %v776, 4
      %v778 = vadd.f32 %v776, %v777
      %v779 = vrot.slane %v778, 2
      %v780 = vadd.f32 %v778, %v779
      %v781 = vrot.slane %v780, 1
      %v782 = vadd.f32 %v780, %v781
      %v783 = vmul.f32 %v753, %v765
      %v784 = vmul.f32 %v754, %v766
      %v785 = vmul.f32 %v755, %v767
      %v786 = vmul.f32 %v756, %v768
      %v787 = vadd.f32 %v783, %v784
      %v788 = vadd.f32 %v787, %v785
      %v789 = vsel %vm47, %v786, 0.0
      %v790 = vadd.f32 %v788, %v789
      %v791 = vrot.slane %v790, 4
      %v792 = vadd.f32 %v790, %v791
      %v793 = vrot.slane %v792, 2
      %v794 = vadd.f32 %v792, %v793
      %v795 = vrot.slane %v794, 1
      %v796 = vadd.f32 %v794, %v795
      %v797 = vsub.f32 %v749, %v782
      %v798 = vsub.f32 %v750, %v782
      %v799 = vsub.f32 %v751, %v782
      %v800 = vsub.f32 %v752, %v782
      %v801 = vsub.f32 %v753, %v796
      %v802 = vsub.f32 %v754, %v796
      %v803 = vsub.f32 %v755, %v796
      %v804 = vsub.f32 %v756, %v796
      %v805 = vmul.f32 %v797, %v797
      %v806 = vmul.f32 %v798, %v798
      %v807 = vmul.f32 %v799, %v799
      %v808 = vmul.f32 %v800, %v800
      %v809 = vmul.f32 %v801, %v801
      %v810 = vmul.f32 %v802, %v802
      %v811 = vmul.f32 %v803, %v803
      %v812 = vmul.f32 %v804, %v804
      %v813 = vadd.f32 %v805, %v809
      %v814 = vadd.f32 %v806, %v810
      %v815 = vadd.f32 %v807, %v811
      %v816 = vadd.f32 %v808, %v812
      %v817 = vsub.f32 0.0, %v813
      %v818 = vsub.f32 0.0, %v814
      %v819 = vsub.f32 0.0, %v815
      %v820 = vsub.f32 0.0, %v816
      %v821 = vstv %s36
      %v822 = vmul.f32 %v817, %v821
      %v823 = vmul.f32 %v818, %v821
      %v824 = vmul.f32 %v819, %v821
      %v825 = vmul.f32 %v820, %v821
      %v826 = vmul.f32 %v822, 1.442695
      %v827 = vpow.pop %v826
      %v828 = vmul.f32 %v823, 1.442695
      %v829 = vpow.pop %v828
      %v830 = vmul.f32 %v824, 1.442695
      %v831 = vpow.pop %v830
      %v832 = vmul.f32 %v825, 1.442695
      %v833 = vpow.pop %v832
      %v834 = vmul.f32 %v782, %v782
      %v835 = vmul.f32 %v796, %v796
      %v836 = vadd.f32 %v834, %v835
      %v837 = vstv %s37
      %vm838 = vcmp.lt.f32.partialorder %v836, %v837
      %v839 = vsel %vm838, 1, 0
      %vm840 = vcmp.eq.s32.totalorder %v839, 1
      %v841 = vsel %vm840, 0.0, %v827
      %v842 = vsel %vm840, 0.0, %v829
      %v843 = vsel %vm840, 0.0, %v831
      %v844 = vsel %vm840, 0.0, %v833
      %v845 = vmul.f32 %v841, 10.0
      %v846 = vmul.f32 %v842, 10.0
      %v847 = vmul.f32 %v843, 10.0
      %v848 = vmul.f32 %v844, 10.0
      %v849 = vmul.f32 %v845, 1.442695
      %v850 = vpow.pop %v849
      %v851 = vmul.f32 %v846, 1.442695
      %v852 = vpow.pop %v851
      %v853 = vmul.f32 %v847, 1.442695
      %v854 = vpow.pop %v853
      %v855 = vmul.f32 %v848, 1.442695
      %v856 = vpow.pop %v855
      %v857 = vadd.f32 %v850, %v852
      %v858 = vadd.f32 %v857, %v854
      %v859 = vsel %vm47, %v856, 0.0
      %v860 = vadd.f32 %v858, %v859
      %v861 = vrot.slane %v860, 4
      %v862 = vadd.f32 %v860, %v861
      %v863 = vrot.slane %v862, 2
      %v864 = vadd.f32 %v862, %v863
      %v865 = vrot.slane %v864, 1
      %v866 = vadd.f32 %v864, %v865
      %v867 = vrcp.pop %v866
      %v868 = vmul.f32 %v850, %v867
      %v869 = vmul.f32 %v852, %v867
      %v870 = vmul.f32 %v854, %v867
      %v871 = vmul.f32 %v856, %v867
      %v872 = vld [vmem:[#allocation2] sm:$0xff]
      %v873 = vld [vmem:[#allocation2 + $0x8] sm:$0xff]
      %v874 = vld [vmem:[#allocation2 + $0x10] sm:$0xff]
      %v875 = vld [vmem:[#allocation2 + $0x18] sm:$0x1]
      %v876 = vmul.f32 %v872, 10.0
      %v877 = vmul.f32 %v873, 10.0
      %v878 = vmul.f32 %v874, 10.0
      %v879 = vmul.f32 %v875, 10.0
      %v880 = vsel %vm47, %v879, -inf
      %v881 = vmax.f32 %v876, %v877
      %v882 = vmax.f32 %v878, %v880
      %v883 = vmax.f32 %v881, %v882
      %v884 = vrot.slane %v883, 4
      %v885 = vmax.f32 %v883, %v884
      %v886 = vrot.slane %v885, 2
      %v887 = vmax.f32 %v885, %v886
      %v888 = vrot.slane %v887, 1
      %v889 = vmax.f32 %v887, %v888
      %v890 = vsub.f32 %v876, %v889
      %v891 = vsub.f32 %v877, %v889
      %v892 = vsub.f32 %v878, %v889
      %v893 = vsub.f32 %v879, %v889
      %v894 = vmul.f32 %v890, 1.442695
      %v895 = vpow.pop %v894
      %v896 = vmul.f32 %v891, 1.442695
      %v897 = vpow.pop %v896
      %v898 = vmul.f32 %v892, 1.442695
      %v899 = vpow.pop %v898
      %v900 = vmul.f32 %v893, 1.442695
      %v901 = vpow.pop %v900
      %v902 = vadd.f32 %v895, %v897
      %v903 = vadd.f32 %v902, %v899
      %v904 = vsel %vm47, %v901, 0.0
      %v905 = vadd.f32 %v903, %v904
      %v906 = vrot.slane %v905, 4
      %v907 = vadd.f32 %v905, %v906
      %v908 = vrot.slane %v907, 2
      %v909 = vadd.f32 %v907, %v908
      %v910 = vrot.slane %v909, 1
      %v911 = vadd.f32 %v909, %v910
      %v912 = vlog2.pop %v911
      %v913 = vmul.f32 %v912, 0.6931472
      %v914 = vsub.f32 %v890, %v913
      %v915 = vsub.f32 %v891, %v913
      %v916 = vsub.f32 %v892, %v913
      %v917 = vsub.f32 %v893, %v913
      %v918 = vmul.f32 %v868, %v914
      %v919 = vmul.f32 %v869, %v915
      %v920 = vmul.f32 %v870, %v916
      %v921 = vmul.f32 %v871, %v917
      %v922 = vadd.f32 %v918, %v919
      %v923 = vadd.f32 %v922, %v920
      %v924 = vsel %vm47, %v921, 0.0
      %v925 = vadd.f32 %v923, %v924
      %v926 = vrot.slane %v925, 4
      %v927 = vadd.f32 %v925, %v926
      %v928 = vrot.slane %v927, 2
      %v929 = vadd.f32 %v927, %v928
      %v930 = vrot.slane %v929, 1
      %v931 = vadd.f32 %v929, %v930
      %v932 = vsub.f32 0.0, %v931
      %v933 = vadd.f32 %v841, %v842
      %v934 = vadd.f32 %v933, %v843
      %v935 = vsel %vm47, %v844, 0.0
      %v936 = vadd.f32 %v934, %v935
      %v937 = vrot.slane %v936, 4
      %v938 = vadd.f32 %v936, %v937
      %v939 = vrot.slane %v938, 2
      %v940 = vadd.f32 %v938, %v939
      %v941 = vrot.slane %v940, 1
      %v942 = vadd.f32 %v940, %v941
      %v943 = vmul.f32 %v942, 0.04
      %v944 = vsub.f32 %v943, 0.01
      %v945 = vmax.f32 %v944, 0.0
      %v946 = vsel %vm47, %v932, %v945
      %947 = vst [vmem:[#allocation8] sm:$0x3] %v946
    $region25: #{tpu_custom_call.1} parent=1 // pred_fallthru
      _
    // Predicated region
    $region26: #{tpu_custom_call.1} parent=1 // pred_check
      _
    $region27: #{tpu_custom_call.1} parent=1 // pred_check_branch
      %949 = sbr.rel (0) target = $region29
    $region28: #{tpu_custom_call.1} parent=1 // pred_region
      %s951 = ssub.s32 32, 32
      %952 = vsyncadd [#allocation7], %s951
      %s954 = sshll.u32 [#allocation8], 4
      %s955 = int_to_ptr.vmem [resolvable:$true] %s954
      %957 = dma.vmem_to_hbm [thread:$0]  %s955, 32, %s4, [#allocation7]
    $region29: #{tpu_custom_call.1} parent=1 // pred_fallthru
      _
    // Predicated region
    $region30: #{tpu_custom_call.1} parent=1 // pred_check
      _
    $region31: #{tpu_custom_call.1} parent=1 // pred_check_branch
      %959 = sbr.rel (0) target = $region33
    $region32: #{tpu_custom_call.1} parent=1 // pred_region
      %960 = dma.done [#allocation7], 32
    $region33: #{tpu_custom_call.1} parent=1 // pred_fallthru
      _
    %961 = vsyncpa [#allocation6], 1
    %962 = vsyncpa [#allocation7], 1

</llo_original>
